<compile_context>
chip_gen: v7x
topology: tpu7x:2x2x1
jax: 0.10.0
libtpu: 0.0.40
codegen_flags: <defaults>
</compile_context>

<pallas_src>
import functools
import math

import jax
import jax.numpy as jnp
from jax.experimental import pallas as pl
from jax.experimental.pallas import tpu as pltpu


def _self_attn_layer_kernel(x_ref, pos_ref, wqk_ref, wv_ref, wo_ref,
                            bqk_ref, bv_ref, bo_ref, lnw_ref, lnb_ref,
                            out_ref, *, nhead, compute_dtype):
    """One batch element per grid step.

    x_ref / pos_ref / out_ref : (1, L, E) activation blocks (batch-major).
    wqk_ref : (E, 2E) fused, pre-transposed Q|K projection (scale folded into Q).
    wv_ref  : (E, E)  pre-transposed V projection.
    wo_ref  : (E, E)  pre-transposed out-projection.
    b*_ref  : (1, .)  f32 projection biases; lnw/lnb: (1, E) LayerNorm affine.
    """
    x = x_ref[0]                              # (L, E) f32  (value path: value=tgt)
    pos = pos_ref[0]
    L, E = x.shape
    dh = E // nhead

    qk_in = (x + pos).astype(compute_dtype)   # q = k = with_pos_embed(tgt, query_pos)
    xc = x.astype(compute_dtype)

    # Fused Q|K projection (one wide MXU call) and V projection; f32 accumulate,
    # single fused bias add each.
    qk = jnp.dot(qk_in, wqk_ref[...],
                 preferred_element_type=jnp.float32) + bqk_ref[...]    # (L, 2E)
    v = jnp.dot(xc, wv_ref[...],
                preferred_element_type=jnp.float32) + bv_ref[...]      # (L, E)

    # NOTE: at production E (a multiple of 128) these lane slices are
    # vreg-aligned; pad E if it is not.
    q = qk[:, :E]
    k = qk[:, E:]

    # Head split: one reshape + one major-dim transpose per tensor -> (H, L, dh)
    # (replaces H per-head lane slices + stack).
    def heads(t):
        return jnp.transpose(t.astype(compute_dtype).reshape(L, nhead, dh),
                             (1, 0, 2))

    qh, kh, vh = heads(q), heads(k), heads(v)

    # Scores for all heads in one batched contraction; softmax math stays f32.
    s = jnp.einsum("hqd,hkd->hqk", qh, kh,
                   preferred_element_type=jnp.float32)                 # (H, L, L)
    s = s - jnp.max(s, axis=-1, keepdims=True)
    p = jnp.exp(s)
    p = p / jnp.sum(p, axis=-1, keepdims=True)     # exact reciprocal (accuracy)

    o = jnp.einsum("hqk,hkd->hqd", p.astype(compute_dtype), vh,
                   preferred_element_type=jnp.float32)                 # (H, L, dh)

    # Head merge + out-projection as a single 2-D MXU contraction
    # (no (H, L, E) intermediate, no cross-head sum).
    o2 = jnp.transpose(o, (1, 0, 2)).reshape(L, E).astype(compute_dtype)
    attn = jnp.dot(o2, wo_ref[...],
                   preferred_element_type=jnp.float32) + bo_ref[...]   # (L, E)

    # Residual (dropout is identity at p=0.0) + LayerNorm over the feature dim.
    y = x + attn
    mean = jnp.mean(y, axis=-1, keepdims=True)
    d = y - mean
    var = jnp.mean(d * d, axis=-1, keepdims=True)
    y_hat = d * jax.lax.rsqrt(var + 1e-5)
    out_ref[0] = (y_hat * lnw_ref[...] + lnb_ref[...]).astype(out_ref.dtype)

    # TODO(synk): tgt_mask / key_padding_mask (both None in this decoder) would
    # be folded into an additive (L, L) f32 bias input per batch element.
    # TODO(synk): the MPSA_CA cross-attention path over the flattened feature
    # map needs a flash-style K/V-tiled kernel (online argmax/gather), not this
    # resident-scores design.


def _full_spec(shape):
    """Grid-invariant (weight) BlockSpec: full array, constant block index."""
    zeros = (0,) * len(shape)
    return pl.BlockSpec(shape, lambda n, _z=zeros: _z)


def self_attention_layer(tgt, query_pos, params, *, nhead,
                         compute_dtype=jnp.float32):
    """tgt, query_pos: (L, N, E) f32 (PyTorch seq-first). Returns (L, N, E) f32."""
    L, N, E = tgt.shape
    assert E % nhead == 0
    dh = E // nhead
    scale = 1.0 / math.sqrt(dh)
    if query_pos is None:
        query_pos = jnp.zeros_like(tgt)

    # Single wrapper-side transpose to batch-major; batch becomes the grid axis.
    x = jnp.transpose(tgt, (1, 0, 2))           # (N, L, E)
    pos = jnp.transpose(query_pos, (1, 0, 2))

    # Pre-transposed / fused weights (grid-invariant work done once in XLA);
    # 1/sqrt(dh) folded into the Q half of the fused Q|K projection + bias.
    w = params["in_proj_weight"]                # (3E, E)
    b = params["in_proj_bias"]                  # (3E,)
    wqk_t = jnp.concatenate([w[:E].T * scale, w[E:2 * E].T],
                            axis=1).astype(compute_dtype)              # (E, 2E)
    wv_t = w[2 * E:].T.astype(compute_dtype)                           # (E, E)
    wo_t = params["out_proj_weight"].T.astype(compute_dtype)           # (E, E)
    bqk = jnp.concatenate([b[:E] * scale, b[E:2 * E]]).reshape(1, 2 * E)
    bv = b[2 * E:].reshape(1, E)
    bo = params["out_proj_bias"].reshape(1, E)
    lnw = params["ln_weight"].reshape(1, E)
    lnb = params["ln_bias"].reshape(1, E)

    kernel = functools.partial(_self_attn_layer_kernel, nhead=nhead,
                               compute_dtype=compute_dtype)
    act_spec = pl.BlockSpec((1, L, E), lambda n: (n, 0, 0))

    flops_per_batch = (2 * L * E * 2 * E       # fused Q|K projection
                       + 2 * L * E * E         # V projection
                       + 2 * L * L * E         # Q @ K^T (all heads)
                       + 2 * L * L * E         # P @ V
                       + 2 * L * E * E)        # out-projection
    itemsize = jnp.dtype(compute_dtype).itemsize
    cost = pl.CostEstimate(
        flops=N * flops_per_batch,
        transcendentals=N * nhead * L * L,
        bytes_accessed=(3 * N * L * E * 4            # x, pos, out (f32)
                        + 4 * E * E * itemsize       # projection weights
                        + 6 * E * 4))                # biases / LN params

    out = pl.pallas_call(
        kernel,
        out_shape=jax.ShapeDtypeStruct((N, L, E), jnp.float32),
        grid_spec=pltpu.PrefetchScalarGridSpec(
            num_scalar_prefetch=0,
            grid=(N,),
            in_specs=[act_spec, act_spec,
                      _full_spec((E, 2 * E)),
                      _full_spec((E, E)),
                      _full_spec((E, E)),
                      _full_spec((1, 2 * E)),
                      _full_spec((1, E)),
                      _full_spec((1, E)),
                      _full_spec((1, E)),
                      _full_spec((1, E))],
            out_specs=act_spec),
        compiler_params=pltpu.CompilerParams(
            dimension_semantics=("parallel",),        # megacore sharding on v7x
            vmem_limit_bytes=32 * 1024 * 1024),
        cost_estimate=cost,
    )(x, pos, wqk_t, wv_t, wo_t, bqk, bv, bo, lnw, lnb)

    return jnp.transpose(out, (1, 0, 2))


def _xavier_uniform(key, shape):
    fan_out, fan_in = shape
    bound = math.sqrt(6.0 / (fan_in + fan_out))
    return jax.random.uniform(key, shape, jnp.float32, -bound, bound)


def _reference(tgt, query_pos, params, *, nhead):
    """Pure-JAX reference mirroring PyTorch forward_post semantics."""
    L, N, E = tgt.shape
    dh = E // nhead
    x = jnp.transpose(tgt, (1, 0, 2))
    pos = jnp.transpose(query_pos, (1, 0, 2))
    qk_in = x + pos
    w = params["in_proj_weight"]
    b = params["in_proj_bias"]
    q = qk_in @ w[:E].T + b[:E]
    k = qk_in @ w[E:2 * E].T + b[E:2 * E]
    v = x @ w[2 * E:].T + b[2 * E:]
    q = q.reshape(N, L, nhead, dh) / math.sqrt(dh)
    k = k.reshape(N, L, nhead, dh)
    v = v.reshape(N, L, nhead, dh)
    s = jnp.einsum("nqhd,nkhd->nhqk", q, k)
    p = jax.nn.softmax(s, axis=-1)
    o = jnp.einsum("nhqk,nkhd->nqhd", p, v).reshape(N, L, E)
    o = o @ params["out_proj_weight"].T + params["out_proj_bias"]
    y = x + o
    mean = jnp.mean(y, axis=-1, keepdims=True)
    var = jnp.mean((y - mean) ** 2, axis=-1, keepdims=True)
    y = (y - mean) / jnp.sqrt(var + 1e-5)
    y = y * params["ln_weight"] + params["ln_bias"]
    return jnp.transpose(y, (1, 0, 2))


if __name__ == "__main__":
    # Small shapes: seq L=8, batch N=2, d_model E=32, nhead=4.
    L, N, E, nhead = 8, 2, 32, 4
    key = jax.random.PRNGKey(0)
    k_tgt, k_pos, k_w1, k_w2 = jax.random.split(key, 4)

    tgt = jax.random.normal(k_tgt, (L, N, E), jnp.float32)
    query_pos = jax.random.normal(k_pos, (L, N, E), jnp.float32)

    params = {
        "in_proj_weight": _xavier_uniform(k_w1, (3 * E, E)),
        "in_proj_bias": jnp.zeros((3 * E,), jnp.float32),
        "out_proj_weight": _xavier_uniform(k_w2, (E, E)),
        "out_proj_bias": jnp.zeros((E,), jnp.float32),
        "ln_weight": jnp.ones((E,), jnp.float32),
        "ln_bias": jnp.zeros((E,), jnp.float32),
    }

    ref = _reference(tgt, query_pos, params, nhead=nhead)

    # f32 MXU path.  Softmax reciprocal is exact; the tolerance only covers the
    # difference between the XLA reference's default f32 matmul precision and
    # the Pallas/Mosaic MXU path (plus the algebraically-exact scale fold).
    out_f32 = jax.block_until_ready(
        self_attention_layer(tgt, query_pos, params, nhead=nhead,
                             compute_dtype=jnp.float32))
    assert out_f32.shape == (L, N, E)
    assert jnp.allclose(out_f32, ref, atol=5e-3, rtol=5e-3), (
        f"f32 mismatch vs reference "
        f"(max abs err {float(jnp.max(jnp.abs(out_f32 - ref)))})")

    # bf16 MXU operands (bf16-native MXU on v5e/v6e/v7x) with f32 accumulation
    # and f32 softmax / LayerNorm.
    out_bf16 = jax.block_until_ready(
        self_attention_layer(tgt, query_pos, params, nhead=nhead,
                             compute_dtype=jnp.bfloat16))
    assert out_bf16.shape == (L, N, E)
    assert jnp.allclose(out_bf16, ref, atol=5e-2, rtol=5e-2), (
        f"bf16 mismatch vs reference "
        f"(max abs err {float(jnp.max(jnp.abs(out_bf16 - ref)))})")

    print("KERNEL_OK")
</pallas_src>

<mosaic_0001>
module attributes {stable_mosaic.version = 11 : i64} {
  func.func @_self_attn_layer_kernel(%arg0: i32, %arg1: memref<1x8x32xf32, #tpu.memory_space<vmem>>, %arg2: memref<1x8x32xf32, #tpu.memory_space<vmem>>, %arg3: memref<32x64xf32, #tpu.memory_space<vmem>>, %arg4: memref<32x32xf32, #tpu.memory_space<vmem>>, %arg5: memref<32x32xf32, #tpu.memory_space<vmem>>, %arg6: memref<1x64xf32, #tpu.memory_space<vmem>>, %arg7: memref<1x32xf32, #tpu.memory_space<vmem>>, %arg8: memref<1x32xf32, #tpu.memory_space<vmem>>, %arg9: memref<1x32xf32, #tpu.memory_space<vmem>>, %arg10: memref<1x32xf32, #tpu.memory_space<vmem>>, %arg11: memref<1x8x32xf32, #tpu.memory_space<vmem>>) attributes {dimension_semantics = [#tpu.dimension_semantics<parallel>], iteration_bounds = array<i64: 2>, scalar_prefetch = 0 : i64, scratch_operands = 0 : i64, tpu.core_type = #tpu.core_type<tc>, window_params = [{transform_indices = @transform_0, window_bounds = array<i64: 1, 8, 32>}, {transform_indices = @transform_1, window_bounds = array<i64: 1, 8, 32>}, {pipeline_mode = #tpu.pipeline_mode<synchronous>, transform_indices = @transform_2, window_bounds = array<i64: 32, 64>}, {pipeline_mode = #tpu.pipeline_mode<synchronous>, transform_indices = @transform_3, window_bounds = array<i64: 32, 32>}, {pipeline_mode = #tpu.pipeline_mode<synchronous>, transform_indices = @transform_4, window_bounds = array<i64: 32, 32>}, {pipeline_mode = #tpu.pipeline_mode<synchronous>, transform_indices = @transform_5, window_bounds = array<i64: 1, 64>}, {pipeline_mode = #tpu.pipeline_mode<synchronous>, transform_indices = @transform_6, window_bounds = array<i64: 1, 32>}, {pipeline_mode = #tpu.pipeline_mode<synchronous>, transform_indices = @transform_7, window_bounds = array<i64: 1, 32>}, {pipeline_mode = #tpu.pipeline_mode<synchronous>, transform_indices = @transform_8, window_bounds = array<i64: 1, 32>}, {pipeline_mode = #tpu.pipeline_mode<synchronous>, transform_indices = @transform_9, window_bounds = array<i64: 1, 32>}, {transform_indices = @transform_10, window_bounds = array<i64: 1, 8, 32>}]} {
    %c0 = arith.constant 0 : index
    %c0_0 = arith.constant 0 : index
    %c0_1 = arith.constant 0 : index
    %0 = vector.load %arg1[%c0, %c0_0, %c0_1] : memref<1x8x32xf32, #tpu.memory_space<vmem>>, vector<1x8x32xf32>
    %1 = vector.shape_cast %0 : vector<1x8x32xf32> to vector<8x32xf32>
    %c0_2 = arith.constant 0 : index
    %c0_3 = arith.constant 0 : index
    %c0_4 = arith.constant 0 : index
    %2 = vector.load %arg2[%c0_2, %c0_3, %c0_4] : memref<1x8x32xf32, #tpu.memory_space<vmem>>, vector<1x8x32xf32>
    %3 = vector.shape_cast %2 : vector<1x8x32xf32> to vector<8x32xf32>
    %4 = arith.addf %1, %3 : vector<8x32xf32>
    %c0_5 = arith.constant 0 : index
    %c0_6 = arith.constant 0 : index
    %5 = vector.load %arg3[%c0_5, %c0_6] : memref<32x64xf32, #tpu.memory_space<vmem>>, vector<32x64xf32>
    %cst = arith.constant dense<0.000000e+00> : vector<8x64xf32>
    %6 = tpu.matmul %4, %5, %cst {dimension_numbers = #tpu.dot_dimension_numbers<[1], [0], [0], [1], [0, 0, 1, 1], [], []>} : vector<8x32xf32>, vector<32x64xf32>, vector<8x64xf32> -> vector<8x64xf32>
    %c0_7 = arith.constant 0 : index
    %c0_8 = arith.constant 0 : index
    %7 = vector.load %arg6[%c0_7, %c0_8] : memref<1x64xf32, #tpu.memory_space<vmem>>, vector<1x64xf32>
    %8 = vector.broadcast %7 : vector<1x64xf32> to vector<8x64xf32>
    %9 = arith.addf %6, %8 : vector<8x64xf32>
    %c0_9 = arith.constant 0 : index
    %c0_10 = arith.constant 0 : index
    %10 = vector.load %arg4[%c0_9, %c0_10] : memref<32x32xf32, #tpu.memory_space<vmem>>, vector<32x32xf32>
    %cst_11 = arith.constant dense<0.000000e+00> : vector<8x32xf32>
    %11 = tpu.matmul %1, %10, %cst_11 {dimension_numbers = #tpu.dot_dimension_numbers<[1], [0], [0], [1], [0, 0, 1, 1], [], []>} : vector<8x32xf32>, vector<32x32xf32>, vector<8x32xf32> -> vector<8x32xf32>
    %c0_12 = arith.constant 0 : index
    %c0_13 = arith.constant 0 : index
    %12 = vector.load %arg7[%c0_12, %c0_13] : memref<1x32xf32, #tpu.memory_space<vmem>>, vector<1x32xf32>
    %13 = vector.broadcast %12 : vector<1x32xf32> to vector<8x32xf32>
    %14 = arith.addf %11, %13 : vector<8x32xf32>
    %15 = vector.extract_strided_slice %9 {offsets = [0, 0], sizes = [8, 32], strides = [1, 1]} : vector<8x64xf32> to vector<8x32xf32>
    %16 = vector.extract_strided_slice %9 {offsets = [0, 32], sizes = [8, 32], strides = [1, 1]} : vector<8x64xf32> to vector<8x32xf32>
    %17 = vector.shape_cast %15 : vector<8x32xf32> to vector<8x4x8xf32>
    %18 = tpu.transpose %17, [1, 0, 2] : vector<8x4x8xf32> -> vector<4x8x8xf32>
    %19 = vector.shape_cast %16 : vector<8x32xf32> to vector<8x4x8xf32>
    %20 = tpu.transpose %19, [1, 0, 2] : vector<8x4x8xf32> -> vector<4x8x8xf32>
    %21 = vector.shape_cast %14 : vector<8x32xf32> to vector<8x4x8xf32>
    %22 = tpu.transpose %21, [1, 0, 2] : vector<8x4x8xf32> -> vector<4x8x8xf32>
    "tpu.trace_start"() <{level = 10 : i32, message = "hqd,hkd->hqk"}> : () -> ()
    %cst_14 = arith.constant dense<0.000000e+00> : vector<4x8x8xf32>
    %23 = tpu.matmul %18, %20, %cst_14 {dimension_numbers = #tpu.dot_dimension_numbers<[2], [2], [1], [1], [0, 0, 0, 1, 1, 1], [0], [0]>} : vector<4x8x8xf32>, vector<4x8x8xf32>, vector<4x8x8xf32> -> vector<4x8x8xf32>
    "tpu.trace_stop"() : () -> ()
    %cst_15 = arith.constant dense<0xFF800000> : vector<4x8xf32>
    %24 = vector.multi_reduction <maximumf>, %23, %cst_15 [2] : vector<4x8x8xf32> to vector<4x8xf32>
    %25 = vector.shape_cast %24 : vector<4x8xf32> to vector<4x8x1xf32>
    %26 = vector.broadcast %25 : vector<4x8x1xf32> to vector<4x8x8xf32>
    %27 = arith.subf %23, %26 : vector<4x8x8xf32>
    %28 = math.exp %27 : vector<4x8x8xf32>
    %cst_16 = arith.constant dense<0.000000e+00> : vector<4x8xf32>
    %29 = vector.multi_reduction <add>, %28, %cst_16 [2] : vector<4x8x8xf32> to vector<4x8xf32>
    %30 = vector.shape_cast %29 : vector<4x8xf32> to vector<4x8x1xf32>
    %31 = vector.broadcast %30 : vector<4x8x1xf32> to vector<4x8x8xf32>
    %32 = arith.divf %28, %31 : vector<4x8x8xf32>
    "tpu.trace_start"() <{level = 10 : i32, message = "hqk,hkd->hqd"}> : () -> ()
    %cst_17 = arith.constant dense<0.000000e+00> : vector<4x8x8xf32>
    %33 = tpu.matmul %32, %22, %cst_17 {dimension_numbers = #tpu.dot_dimension_numbers<[2], [1], [1], [2], [0, 0, 0, 1, 1, 2], [0], [0]>} : vector<4x8x8xf32>, vector<4x8x8xf32>, vector<4x8x8xf32> -> vector<4x8x8xf32>
    "tpu.trace_stop"() : () -> ()
    %34 = tpu.transpose %33, [1, 0, 2] : vector<4x8x8xf32> -> vector<8x4x8xf32>
    %35 = vector.shape_cast %34 : vector<8x4x8xf32> to vector<8x32xf32>
    %c0_18 = arith.constant 0 : index
    %c0_19 = arith.constant 0 : index
    %36 = vector.load %arg5[%c0_18, %c0_19] : memref<32x32xf32, #tpu.memory_space<vmem>>, vector<32x32xf32>
    %cst_20 = arith.constant dense<0.000000e+00> : vector<8x32xf32>
    %37 = tpu.matmul %35, %36, %cst_20 {dimension_numbers = #tpu.dot_dimension_numbers<[1], [0], [0], [1], [0, 0, 1, 1], [], []>} : vector<8x32xf32>, vector<32x32xf32>, vector<8x32xf32> -> vector<8x32xf32>
    %c0_21 = arith.constant 0 : index
    %c0_22 = arith.constant 0 : index
    %38 = vector.load %arg8[%c0_21, %c0_22] : memref<1x32xf32, #tpu.memory_space<vmem>>, vector<1x32xf32>
    %39 = vector.broadcast %38 : vector<1x32xf32> to vector<8x32xf32>
    %40 = arith.addf %37, %39 : vector<8x32xf32>
    %41 = arith.addf %1, %40 : vector<8x32xf32>
    %cst_23 = arith.constant dense<0.000000e+00> : vector<8xf32>
    %42 = vector.multi_reduction <add>, %41, %cst_23 [1] : vector<8x32xf32> to vector<8xf32>
    %43 = vector.shape_cast %42 : vector<8xf32> to vector<8x1xf32>
    %cst_24 = arith.constant 3.200000e+01 : f32
    %44 = vector.broadcast %cst_24 : f32 to vector<8x1xf32>
    %45 = arith.divf %43, %44 : vector<8x1xf32>
    %46 = vector.broadcast %45 : vector<8x1xf32> to vector<8x32xf32>
    %47 = arith.subf %41, %46 : vector<8x32xf32>
    %48 = arith.mulf %47, %47 : vector<8x32xf32>
    %cst_25 = arith.constant dense<0.000000e+00> : vector<8xf32>
    %49 = vector.multi_reduction <add>, %48, %cst_25 [1] : vector<8x32xf32> to vector<8xf32>
    %50 = vector.shape_cast %49 : vector<8xf32> to vector<8x1xf32>
    %cst_26 = arith.constant 3.200000e+01 : f32
    %51 = vector.broadcast %cst_26 : f32 to vector<8x1xf32>
    %52 = arith.divf %50, %51 : vector<8x1xf32>
    %cst_27 = arith.constant 9.99999974E-6 : f32
    %53 = vector.broadcast %cst_27 : f32 to vector<8x1xf32>
    %54 = arith.addf %52, %53 : vector<8x1xf32>
    %55 = math.rsqrt %54 : vector<8x1xf32>
    %56 = vector.broadcast %55 : vector<8x1xf32> to vector<8x32xf32>
    %57 = arith.mulf %47, %56 : vector<8x32xf32>
    %c0_28 = arith.constant 0 : index
    %c0_29 = arith.constant 0 : index
    %58 = vector.load %arg9[%c0_28, %c0_29] : memref<1x32xf32, #tpu.memory_space<vmem>>, vector<1x32xf32>
    %59 = vector.broadcast %58 : vector<1x32xf32> to vector<8x32xf32>
    %60 = arith.mulf %57, %59 : vector<8x32xf32>
    %c0_30 = arith.constant 0 : index
    %c0_31 = arith.constant 0 : index
    %61 = vector.load %arg10[%c0_30, %c0_31] : memref<1x32xf32, #tpu.memory_space<vmem>>, vector<1x32xf32>
    %62 = vector.broadcast %61 : vector<1x32xf32> to vector<8x32xf32>
    %63 = arith.addf %60, %62 : vector<8x32xf32>
    %c0_32 = arith.constant 0 : index
    %c0_33 = arith.constant 0 : index
    %c0_34 = arith.constant 0 : index
    %64 = vector.load %arg11[%c0_32, %c0_33, %c0_34] : memref<1x8x32xf32, #tpu.memory_space<vmem>>, vector<1x8x32xf32>
    %65 = vector.shape_cast %64 : vector<1x8x32xf32> to vector<8x32xf32>
    %66 = vector.shape_cast %63 : vector<8x32xf32> to vector<1x8x32xf32>
    tpu.vector_store %arg11[%c0_32, %c0_33, %c0_34], %66 {strides = array<i32>} : memref<1x8x32xf32, #tpu.memory_space<vmem>>, vector<1x8x32xf32>,
    return
  }
  func.func @transform_0(%arg0: i32) -> (i32, i32, i32) {
    %c0_i32 = arith.constant 0 : i32
    %c0_i32_0 = arith.constant 0 : i32
    %c0_i32_1 = arith.constant 0 : i32
    return %arg0, %c0_i32, %c0_i32_0 : i32, i32, i32
  }
  func.func @transform_1(%arg0: i32) -> (i32, i32, i32) {
    %c0_i32 = arith.constant 0 : i32
    %c0_i32_0 = arith.constant 0 : i32
    %c0_i32_1 = arith.constant 0 : i32
    return %arg0, %c0_i32, %c0_i32_0 : i32, i32, i32
  }
  func.func @transform_2(%arg0: i32) -> (i32, i32) {
    %c0_i32 = arith.constant 0 : i32
    %c0_i32_0 = arith.constant 0 : i32
    %c0_i32_1 = arith.constant 0 : i32
    return %c0_i32, %c0_i32_0 : i32, i32
  }
  func.func @transform_3(%arg0: i32) -> (i32, i32) {
    %c0_i32 = arith.constant 0 : i32
    %c0_i32_0 = arith.constant 0 : i32
    %c0_i32_1 = arith.constant 0 : i32
    return %c0_i32, %c0_i32_0 : i32, i32
  }
  func.func @transform_4(%arg0: i32) -> (i32, i32) {
    %c0_i32 = arith.constant 0 : i32
    %c0_i32_0 = arith.constant 0 : i32
    %c0_i32_1 = arith.constant 0 : i32
    return %c0_i32, %c0_i32_0 : i32, i32
  }
  func.func @transform_5(%arg0: i32) -> (i32, i32) {
    %c0_i32 = arith.constant 0 : i32
    %c0_i32_0 = arith.constant 0 : i32
    %c0_i32_1 = arith.constant 0 : i32
    return %c0_i32, %c0_i32_0 : i32, i32
  }
  func.func @transform_6(%arg0: i32) -> (i32, i32) {
    %c0_i32 = arith.constant 0 : i32
    %c0_i32_0 = arith.constant 0 : i32
    %c0_i32_1 = arith.constant 0 : i32
    return %c0_i32, %c0_i32_0 : i32, i32
  }
  func.func @transform_7(%arg0: i32) -> (i32, i32) {
    %c0_i32 = arith.constant 0 : i32
    %c0_i32_0 = arith.constant 0 : i32
    %c0_i32_1 = arith.constant 0 : i32
    return %c0_i32, %c0_i32_0 : i32, i32
  }
  func.func @transform_8(%arg0: i32) -> (i32, i32) {
    %c0_i32 = arith.constant 0 : i32
    %c0_i32_0 = arith.constant 0 : i32
    %c0_i32_1 = arith.constant 0 : i32
    return %c0_i32, %c0_i32_0 : i32, i32
  }
  func.func @transform_9(%arg0: i32) -> (i32, i32) {
    %c0_i32 = arith.constant 0 : i32
    %c0_i32_0 = arith.constant 0 : i32
    %c0_i32_1 = arith.constant 0 : i32
    return %c0_i32, %c0_i32_0 : i32, i32
  }
  func.func @transform_10(%arg0: i32) -> (i32, i32, i32) {
    %c0_i32 = arith.constant 0 : i32
    %c0_i32_0 = arith.constant 0 : i32
    %c0_i32_1 = arith.constant 0 : i32
    return %arg0, %c0_i32, %c0_i32_0 : i32, i32, i32
  }
}

</mosaic_0001>

<llo_original>
// kernel: tpu_custom_call.1
$region0: #{tpu_custom_call.1}
  #allocation0 [shape = 'u32[]', space=smem, size = 0x4, offset = 0x4, fixed_abs, tag = 'smem constant byte address 0x4 - core index']
  #allocation1 [shape = 'u32[144,128]{1,0:T(1,128)}', space=vmem, size = 0x12000, scoped, tag = 'internal scratch']
  %s0 = inlined_call_operand.hbm [shape: f32[2,8,32], index: 0, kind: input, shape index: {}]
  %s1 = inlined_call_operand.hbm [shape: f32[2,8,32], index: 1, kind: input, shape index: {}]
  %s2 = inlined_call_operand.hbm [shape: f32[32,64], index: 2, kind: input, shape index: {}]
  %s3 = inlined_call_operand.hbm [shape: f32[32,32], index: 3, kind: input, shape index: {}]
  %s4 = inlined_call_operand.hbm [shape: f32[32,32], index: 4, kind: input, shape index: {}]
  %s5 = inlined_call_operand.vmem [shape: f32[1,64], index: 5, kind: input, shape index: {}]
  %s6 = inlined_call_operand.vmem [shape: f32[1,32], index: 6, kind: input, shape index: {}]
  %s7 = inlined_call_operand.vmem [shape: f32[1,32], index: 7, kind: input, shape index: {}]
  %s8 = inlined_call_operand.vmem [shape: f32[1,32], index: 8, kind: input, shape index: {}]
  %s9 = inlined_call_operand.vmem [shape: f32[1,32], index: 9, kind: input, shape index: {}]
  %s10 = inlined_call_operand.hbm [shape: f32[2,8,32], index: 10, kind: output, shape index: {}]
  %s11 = sld [smem:[#allocation0]]
  $region93: #{tpu_custom_call.1} parent=0
    _
  %s13 = ssub.s32 1, %s11
  %s14 = scalar_select 0, %s13, %s11
  $region1: #{tpu_custom_call.1} parent=0
    #allocation2 [shape = 'u8[8192]{0}', space=vmem, size = 0x2000, scoped, tag = 'input window, operand 0']
    #allocation3 [shape = 's32[2]{0}', space=sflag, size = 0x8, scoped, tag = 'scoped memory for tpu_custom_call.1']
    #allocation4 [shape = 's32[2]{0}', space=sflag, size = 0x8, scoped, tag = 'scoped memory for tpu_custom_call.1']
    #allocation5 [shape = 'u8[8192]{0}', space=vmem, size = 0x2000, scoped, tag = 'input window, operand 1']
    #allocation6 [shape = 's32[2]{0}', space=sflag, size = 0x8, scoped, tag = 'scoped memory for tpu_custom_call.1']
    #allocation7 [shape = 'u8[16384]{0}', space=vmem, size = 0x4000, scoped, tag = 'input window, operand 2, single buffered']
    #allocation8 [shape = 'u8[16384]{0}', space=vmem, size = 0x4000, scoped, tag = 'input window, operand 3, single buffered']
    #allocation9 [shape = 's32[1]{0}', space=sflag, size = 0x4, scoped, tag = 'scoped memory for tpu_custom_call.1']
    #allocation10 [shape = 'u8[16384]{0}', space=vmem, size = 0x4000, scoped, tag = 'input window, operand 4, single buffered']
    #allocation11 [shape = 'u8[8192]{0}', space=vmem, size = 0x2000, scoped, tag = 'output window, operand 0']
    %15 = vsyncpa [#allocation3], 0
    %s16 = scalar_lea.sflag [#allocation3], 1
    %17 = vsyncpa %s16, 0
    %18 = vsyncpa [#allocation6], 0
    %s19 = scalar_lea.sflag [#allocation6], 1
    %20 = vsyncpa %s19, 0
    %21 = vsyncpa [#allocation9], 0
    %22 = vsyncpa [#allocation4], 0
    %s23 = scalar_lea.sflag [#allocation4], 1
    %24 = vsyncpa %s23, 0
    loop: start=0, step=1, limit=4
    $region2: #{tpu_custom_call.1} parent=1 // loop_pre_header
      _
    $region3: #{tpu_custom_call.1} parent=1 // loop_header
      %s26 = sphi 0, %s30
      %p27 = scmp.ge.s32.totalorder %s26, 4
      %s36 = sphi 0, %s38
      %s39 = sphi 0, %s36
      %s40 = sphi 0, %s39
      %s56 = sphi 0, %s40
      %s62 = sphi 0, %s64
      %s65 = sphi 0, %s62
      %s66 = sphi 0, %s65
      %s82 = sphi 0, %s66
      %s86 = sphi 0, %s86
      %s88 = sphi 0, %s86
      %s89 = sphi 0, %s88
      %s103 = sphi 0, %s89
      %s107 = sphi 0, %s107
      %s109 = sphi 0, %s107
      %s110 = sphi 0, %s109
      %s124 = sphi 0, %s110
      %s128 = sphi 0, %s128
      %s130 = sphi 0, %s128
      %s131 = sphi 0, %s130
      %s145 = sphi 0, %s131
      %s149 = sphi 0, %s149
      %s151 = sphi 0, %s149
      %s152 = sphi 0, %s151
      %s166 = sphi 0, %s152
      %s170 = sphi 0, %s170
      %s172 = sphi 0, %s170
      %s173 = sphi 0, %s172
      %s187 = sphi 0, %s173
      %s191 = sphi 0, %s191
      %s193 = sphi 0, %s191
      %s194 = sphi 0, %s193
      %s208 = sphi 0, %s194
      %s212 = sphi 0, %s212
      %s214 = sphi 0, %s212
      %s215 = sphi 0, %s214
      %s229 = sphi 0, %s215
      %s233 = sphi 0, %s233
      %s235 = sphi 0, %s233
      %s236 = sphi 0, %s235
      %s250 = sphi 0, %s236
      %s256 = sphi 0, %s258
      %s259 = sphi 0, %s256
      %s260 = sphi 0, %s259
      %s276 = sphi 0, %s260
    $region4: #{tpu_custom_call.1} parent=1 // loop_header_branch
      %29 = sbr.rel (%p27) target = $region8
    $region5: #{tpu_custom_call.1} parent=1 // loop_body
      %s31 = ssub.s32 %s26, 1
      %s32 = ssub.s32 %s26, 2
      %s33 = sadd.s32 %s26, 1
      %s34 = ssub.s32 %s26, %s33
      %p35 = scmp.eq.s32.totalorder %s34, 0
      %s37 = sadd.s32 %s36, 1
      %s38 = scalar_select %p35, %s36, %s37
      %p41 = pneg %p35
      %p42 = scmp.eq.s32.totalorder %s26, 1
      %p43 = por %p41, %p42
      %p44 = scmp.ne.s32.totalorder %s36, %s39
      %p45 = scmp.eq.s32.totalorder %s26, 0
      %p46 = por %p44, %p45
      %p47 = scmp.ne.s32.totalorder %s36, %s39
      %p48 = scmp.eq.s32.totalorder %s31, 1
      %p49 = por %p47, %p48
      %p50 = scmp.ne.s32.totalorder %s39, %s40
      %p51 = scmp.eq.s32.totalorder %s31, 0
      %p52 = por %p50, %p51
      %p53 = scmp.ne.s32.totalorder %s39, %s40
      %p54 = scmp.eq.s32.totalorder %s32, 1
      %p55 = por %p53, %p54
      %p57 = scmp.ne.s32.totalorder %s40, %s56
      %p58 = scmp.eq.s32.totalorder %s32, 0
      %p59 = por %p57, %p58
      %s60 = ssub.s32 %s26, %s33
      %p61 = scmp.eq.s32.totalorder %s60, 0
      %s63 = sadd.s32 %s62, 1
      %s64 = scalar_select %p61, %s62, %s63
      %p67 = pneg %p61
      %p68 = scmp.eq.s32.totalorder %s26, 1
      %p69 = por %p67, %p68
      %p70 = scmp.ne.s32.totalorder %s62, %s65
      %p71 = scmp.eq.s32.totalorder %s26, 0
      %p72 = por %p70, %p71
      %p73 = scmp.ne.s32.totalorder %s62, %s65
      %p74 = scmp.eq.s32.totalorder %s31, 1
      %p75 = por %p73, %p74
      %p76 = scmp.ne.s32.totalorder %s65, %s66
      %p77 = scmp.eq.s32.totalorder %s31, 0
      %p78 = por %p76, %p77
      %p79 = scmp.ne.s32.totalorder %s65, %s66
      %p80 = scmp.eq.s32.totalorder %s32, 1
      %p81 = por %p79, %p80
      %p83 = scmp.ne.s32.totalorder %s66, %s82
      %p84 = scmp.eq.s32.totalorder %s32, 0
      %p85 = por %p83, %p84
      %s87 = sadd.s32 %s86, 1
      %p90 = scmp.eq.s32.totalorder %s26, 1
      %p91 = scmp.ne.s32.totalorder %s86, %s88
      %p92 = scmp.eq.s32.totalorder %s26, 0
      %p93 = por %p91, %p92
      %p94 = scmp.ne.s32.totalorder %s86, %s88
      %p95 = scmp.eq.s32.totalorder %s31, 1
      %p96 = por %p94, %p95
      %p97 = scmp.ne.s32.totalorder %s88, %s89
      %p98 = scmp.eq.s32.totalorder %s31, 0
      %p99 = por %p97, %p98
      %p100 = scmp.ne.s32.totalorder %s88, %s89
      %p101 = scmp.eq.s32.totalorder %s32, 1
      %p102 = por %p100, %p101
      %p104 = scmp.ne.s32.totalorder %s89, %s103
      %p105 = scmp.eq.s32.totalorder %s32, 0
      %p106 = por %p104, %p105
      %s108 = sadd.s32 %s107, 1
      %p111 = scmp.eq.s32.totalorder %s26, 1
      %p112 = scmp.ne.s32.totalorder %s107, %s109
      %p113 = scmp.eq.s32.totalorder %s26, 0
      %p114 = por %p112, %p113
      %p115 = scmp.ne.s32.totalorder %s107, %s109
      %p116 = scmp.eq.s32.totalorder %s31, 1
      %p117 = por %p115, %p116
      %p118 = scmp.ne.s32.totalorder %s109, %s110
      %p119 = scmp.eq.s32.totalorder %s31, 0
      %p120 = por %p118, %p119
      %p121 = scmp.ne.s32.totalorder %s109, %s110
      %p122 = scmp.eq.s32.totalorder %s32, 1
      %p123 = por %p121, %p122
      %p125 = scmp.ne.s32.totalorder %s110, %s124
      %p126 = scmp.eq.s32.totalorder %s32, 0
      %p127 = por %p125, %p126
      %s129 = sadd.s32 %s128, 1
      %p132 = scmp.eq.s32.totalorder %s26, 1
      %p133 = scmp.ne.s32.totalorder %s128, %s130
      %p134 = scmp.eq.s32.totalorder %s26, 0
      %p135 = por %p133, %p134
      %p136 = scmp.ne.s32.totalorder %s128, %s130
      %p137 = scmp.eq.s32.totalorder %s31, 1
      %p138 = por %p136, %p137
      %p139 = scmp.ne.s32.totalorder %s130, %s131
      %p140 = scmp.eq.s32.totalorder %s31, 0
      %p141 = por %p139, %p140
      %p142 = scmp.ne.s32.totalorder %s130, %s131
      %p143 = scmp.eq.s32.totalorder %s32, 1
      %p144 = por %p142, %p143
      %p146 = scmp.ne.s32.totalorder %s131, %s145
      %p147 = scmp.eq.s32.totalorder %s32, 0
      %p148 = por %p146, %p147
      %s150 = sadd.s32 %s149, 1
      %p153 = scmp.eq.s32.totalorder %s26, 1
      %p154 = scmp.ne.s32.totalorder %s149, %s151
      %p155 = scmp.eq.s32.totalorder %s26, 0
      %p156 = por %p154, %p155
      %p157 = scmp.ne.s32.totalorder %s149, %s151
      %p158 = scmp.eq.s32.totalorder %s31, 1
      %p159 = por %p157, %p158
      %p160 = scmp.ne.s32.totalorder %s151, %s152
      %p161 = scmp.eq.s32.totalorder %s31, 0
      %p162 = por %p160, %p161
      %p163 = scmp.ne.s32.totalorder %s151, %s152
      %p164 = scmp.eq.s32.totalorder %s32, 1
      %p165 = por %p163, %p164
      %p167 = scmp.ne.s32.totalorder %s152, %s166
      %p168 = scmp.eq.s32.totalorder %s32, 0
      %p169 = por %p167, %p168
      %s171 = sadd.s32 %s170, 1
      %p174 = scmp.eq.s32.totalorder %s26, 1
      %p175 = scmp.ne.s32.totalorder %s170, %s172
      %p176 = scmp.eq.s32.totalorder %s26, 0
      %p177 = por %p175, %p176
      %p178 = scmp.ne.s32.totalorder %s170, %s172
      %p179 = scmp.eq.s32.totalorder %s31, 1
      %p180 = por %p178, %p179
      %p181 = scmp.ne.s32.totalorder %s172, %s173
      %p182 = scmp.eq.s32.totalorder %s31, 0
      %p183 = por %p181, %p182
      %p184 = scmp.ne.s32.totalorder %s172, %s173
      %p185 = scmp.eq.s32.totalorder %s32, 1
      %p186 = por %p184, %p185
      %p188 = scmp.ne.s32.totalorder %s173, %s187
      %p189 = scmp.eq.s32.totalorder %s32, 0
      %p190 = por %p188, %p189
      %s192 = sadd.s32 %s191, 1
      %p195 = scmp.eq.s32.totalorder %s26, 1
      %p196 = scmp.ne.s32.totalorder %s191, %s193
      %p197 = scmp.eq.s32.totalorder %s26, 0
      %p198 = por %p196, %p197
      %p199 = scmp.ne.s32.totalorder %s191, %s193
      %p200 = scmp.eq.s32.totalorder %s31, 1
      %p201 = por %p199, %p200
      %p202 = scmp.ne.s32.totalorder %s193, %s194
      %p203 = scmp.eq.s32.totalorder %s31, 0
      %p204 = por %p202, %p203
      %p205 = scmp.ne.s32.totalorder %s193, %s194
      %p206 = scmp.eq.s32.totalorder %s32, 1
      %p207 = por %p205, %p206
      %p209 = scmp.ne.s32.totalorder %s194, %s208
      %p210 = scmp.eq.s32.totalorder %s32, 0
      %p211 = por %p209, %p210
      %s213 = sadd.s32 %s212, 1
      %p216 = scmp.eq.s32.totalorder %s26, 1
      %p217 = scmp.ne.s32.totalorder %s212, %s214
      %p218 = scmp.eq.s32.totalorder %s26, 0
      %p219 = por %p217, %p218
      %p220 = scmp.ne.s32.totalorder %s212, %s214
      %p221 = scmp.eq.s32.totalorder %s31, 1
      %p222 = por %p220, %p221
      %p223 = scmp.ne.s32.totalorder %s214, %s215
      %p224 = scmp.eq.s32.totalorder %s31, 0
      %p225 = por %p223, %p224
      %p226 = scmp.ne.s32.totalorder %s214, %s215
      %p227 = scmp.eq.s32.totalorder %s32, 1
      %p228 = por %p226, %p227
      %p230 = scmp.ne.s32.totalorder %s215, %s229
      %p231 = scmp.eq.s32.totalorder %s32, 0
      %p232 = por %p230, %p231
      %s234 = sadd.s32 %s233, 1
      %p237 = scmp.eq.s32.totalorder %s26, 1
      %p238 = scmp.ne.s32.totalorder %s233, %s235
      %p239 = scmp.eq.s32.totalorder %s26, 0
      %p240 = por %p238, %p239
      %p241 = scmp.ne.s32.totalorder %s233, %s235
      %p242 = scmp.eq.s32.totalorder %s31, 1
      %p243 = por %p241, %p242
      %p244 = scmp.ne.s32.totalorder %s235, %s236
      %p245 = scmp.eq.s32.totalorder %s31, 0
      %p246 = por %p244, %p245
      %p247 = scmp.ne.s32.totalorder %s235, %s236
      %p248 = scmp.eq.s32.totalorder %s32, 1
      %p249 = por %p247, %p248
      %p251 = scmp.ne.s32.totalorder %s236, %s250
      %p252 = scmp.eq.s32.totalorder %s32, 0
      %p253 = por %p251, %p252
      %s254 = ssub.s32 %s26, %s33
      %p255 = scmp.eq.s32.totalorder %s254, 0
      %s257 = sadd.s32 %s256, 1
      %s258 = scalar_select %p255, %s256, %s257
      %p261 = pneg %p255
      %p262 = scmp.eq.s32.totalorder %s26, 1
      %p263 = por %p261, %p262
      %p264 = scmp.ne.s32.totalorder %s256, %s259
      %p265 = scmp.eq.s32.totalorder %s26, 0
      %p266 = por %p264, %p265
      %p267 = scmp.ne.s32.totalorder %s256, %s259
      %p268 = scmp.eq.s32.totalorder %s31, 1
      %p269 = por %p267, %p268
      %p270 = scmp.ne.s32.totalorder %s259, %s260
      %p271 = scmp.eq.s32.totalorder %s31, 0
      %p272 = por %p270, %p271
      %p273 = scmp.ne.s32.totalorder %s259, %s260
      %p274 = scmp.eq.s32.totalorder %s32, 1
      %p275 = por %p273, %p274
      %p277 = scmp.ne.s32.totalorder %s260, %s276
      %p278 = scmp.eq.s32.totalorder %s32, 0
      %p279 = por %p277, %p278
      %p280 = scmp.le.s32.totalorder 1, %s26
      %p281 = scmp.lt.s32.totalorder %s26, 3
      %p282 = pnand %p280, %p281
      %p283 = pneg %p282
      // Predicated region
      $region9: #{tpu_custom_call.1} parent=5 // pred_check
        _
      $region10: #{tpu_custom_call.1} parent=5 // pred_check_branch
        %285 = sbr.rel (%p282) target = $region12
      $region11: #{tpu_custom_call.1} parent=5 // pred_region
        %s286 = ssub.s32 %s26, 1
        // Predicated region
        $region13: #{tpu_custom_call.1} parent=11 // pred_check
          %p287 = pneg %p99
        $region14: #{tpu_custom_call.1} parent=11 // pred_check_branch
          %289 = sbr.rel (%p287) target = $region16
        $region15: #{tpu_custom_call.1} parent=11 // pred_region
          %s291 = ssub.s32 512, 512
          %292 = vsyncadd [#allocation6], %s291
          %s293 = sshll.u32 [#allocation7], 4
          %s294 = int_to_ptr.vmem [resolvable:$true] %s293
          %299 = dma.hbm_to_vmem [thread:$0]  %s2, 512, %s294, [#allocation6], 128, 128, 8
        $region16: #{tpu_custom_call.1} parent=11 // pred_fallthru
          _
        // Predicated region
        $region17: #{tpu_custom_call.1} parent=11 // pred_check
          %p300 = pneg %p120
        $region18: #{tpu_custom_call.1} parent=11 // pred_check_branch
          %302 = sbr.rel (%p300) target = $region20
        $region19: #{tpu_custom_call.1} parent=11 // pred_region
          %s304 = ssub.s32 512, 512
          %305 = vsyncadd [#allocation9], %s304
          %s306 = sshll.u32 [#allocation8], 4
          %s307 = int_to_ptr.vmem [resolvable:$true] %s306
          %312 = dma.hbm_to_vmem [thread:$0]  %s3, 512, %s307, [#allocation9], 128, 128, 8
        $region20: #{tpu_custom_call.1} parent=11 // pred_fallthru
          _
        // Predicated region
        $region21: #{tpu_custom_call.1} parent=11 // pred_check
          %p313 = pneg %p141
        $region22: #{tpu_custom_call.1} parent=11 // pred_check_branch
          %315 = sbr.rel (%p313) target = $region24
        $region23: #{tpu_custom_call.1} parent=11 // pred_region
          %s317 = ssub.s32 512, 512
          %318 = vsyncadd [#allocation9], %s317
          %s319 = sshll.u32 [#allocation10], 4
          %s320 = int_to_ptr.vmem [resolvable:$true] %s319
          %325 = dma.hbm_to_vmem [thread:$0]  %s4, 512, %s320, [#allocation9], 128, 128, 8
        $region24: #{tpu_custom_call.1} parent=11 // pred_fallthru
          _
        // Predicated region
        $region25: #{tpu_custom_call.1} parent=11 // pred_check
          %p326 = pneg %p162
        $region26: #{tpu_custom_call.1} parent=11 // pred_check_branch
          %328 = sbr.rel (%p326) target = $region28
        $region27: #{tpu_custom_call.1} parent=11 // pred_region
          _
        $region28: #{tpu_custom_call.1} parent=11 // pred_fallthru
          _
        // Predicated region
        $region29: #{tpu_custom_call.1} parent=11 // pred_check
          %p329 = pneg %p183
        $region30: #{tpu_custom_call.1} parent=11 // pred_check_branch
          %331 = sbr.rel (%p329) target = $region32
        $region31: #{tpu_custom_call.1} parent=11 // pred_region
          _
        $region32: #{tpu_custom_call.1} parent=11 // pred_fallthru
          _
        // Predicated region
        $region33: #{tpu_custom_call.1} parent=11 // pred_check
          %p332 = pneg %p204
        $region34: #{tpu_custom_call.1} parent=11 // pred_check_branch
          %334 = sbr.rel (%p332) target = $region36
        $region35: #{tpu_custom_call.1} parent=11 // pred_region
          _
        $region36: #{tpu_custom_call.1} parent=11 // pred_fallthru
          _
        // Predicated region
        $region37: #{tpu_custom_call.1} parent=11 // pred_check
          %p335 = pneg %p225
        $region38: #{tpu_custom_call.1} parent=11 // pred_check_branch
          %337 = sbr.rel (%p335) target = $region40
        $region39: #{tpu_custom_call.1} parent=11 // pred_region
          _
        $region40: #{tpu_custom_call.1} parent=11 // pred_fallthru
          _
        // Predicated region
        $region41: #{tpu_custom_call.1} parent=11 // pred_check
          %p338 = pneg %p246
        $region42: #{tpu_custom_call.1} parent=11 // pred_check_branch
          %340 = sbr.rel (%p338) target = $region44
        $region43: #{tpu_custom_call.1} parent=11 // pred_region
          _
        $region44: #{tpu_custom_call.1} parent=11 // pred_fallthru
          _
      $region12: #{tpu_custom_call.1} parent=5 // pred_fallthru
        _
      %p341 = scmp.lt.s32.totalorder %s26, 2
      // Predicated region
      $region45: #{tpu_custom_call.1} parent=5 // pred_check
        %p342 = pneg %p341
      $region46: #{tpu_custom_call.1} parent=5 // pred_check_branch
        %344 = sbr.rel (%p342) target = $region48
      $region47: #{tpu_custom_call.1} parent=5 // pred_region
        // Predicated region
        $region49: #{tpu_custom_call.1} parent=47 // pred_check
          %p345 = pneg %p46
        $region50: #{tpu_custom_call.1} parent=47 // pred_check_branch
          %347 = sbr.rel (%p345) target = $region52
        $region51: #{tpu_custom_call.1} parent=47 // pred_region
          %s348 = sand.u32 %s36, 1
          %s349 = scalar_lea.sflag [#allocation3], %s348
          %s350 = sand.u32 %s36, 1
          %s351 = smul.addr %s350, 8
          %s352 = scalar_lea.vmem [#allocation2], %s351
          %s354 = ssub.s32 128, 128
          %355 = vsyncadd %s349, %s354
          %s356 = smul.addr %s26, 128
          %s357 = scalar_lea.hbm %s0, %s356
          %s359 = sshll.u32 %s352, 4
          %s360 = int_to_ptr.vmem [resolvable:$true] %s359
          %362 = dma.hbm_to_vmem [thread:$0]  %s357, 128, %s360, %s349
        $region52: #{tpu_custom_call.1} parent=47 // pred_fallthru
          _
        // Predicated region
        $region53: #{tpu_custom_call.1} parent=47 // pred_check
          %p363 = pneg %p72
        $region54: #{tpu_custom_call.1} parent=47 // pred_check_branch
          %365 = sbr.rel (%p363) target = $region56
        $region55: #{tpu_custom_call.1} parent=47 // pred_region
          %s366 = sand.u32 %s26, 1
          %s367 = scalar_lea.sflag [#allocation6], %s366
          %s368 = sand.u32 %s62, 1
          %s369 = smul.addr %s368, 8
          %s370 = scalar_lea.vmem [#allocation5], %s369
          %s372 = ssub.s32 128, 128
          %373 = vsyncadd %s367, %s372
          %s374 = smul.addr %s26, 128
          %s375 = scalar_lea.hbm %s1, %s374
          %s377 = sshll.u32 %s370, 4
          %s378 = int_to_ptr.vmem [resolvable:$true] %s377
          %380 = dma.hbm_to_vmem [thread:$0]  %s375, 128, %s378, %s367
        $region56: #{tpu_custom_call.1} parent=47 // pred_fallthru
          _
      $region48: #{tpu_custom_call.1} parent=5 // pred_fallthru
        _
      %p381 = scmp.le.s32.totalorder 1, %s26
      %p382 = scmp.lt.s32.totalorder %s26, 3
      %p383 = pnand %p381, %p382
      %p384 = pneg %p383
      // Predicated region
      $region57: #{tpu_custom_call.1} parent=5 // pred_check
        _
      $region58: #{tpu_custom_call.1} parent=5 // pred_check_branch
        %386 = sbr.rel (%p383) target = $region60
      $region59: #{tpu_custom_call.1} parent=5 // pred_region
        %s387 = ssub.s32 %s26, 1
        %s388 = sand.u32 %s39, 1
        %s389 = scalar_lea.sflag [#allocation3], %s388
        %s390 = sand.u32 %s39, 1
        %s391 = smul.addr %s390, 8
        %s392 = scalar_lea.vmem [#allocation2], %s391
        // Predicated region
        $region61: #{tpu_custom_call.1} parent=59 // pred_check
          %p393 = pneg %p52
        $region62: #{tpu_custom_call.1} parent=59 // pred_check_branch
          %395 = sbr.rel (%p393) target = $region64
        $region63: #{tpu_custom_call.1} parent=59 // pred_region
          %396 = dma.done %s389, 128
        $region64: #{tpu_custom_call.1} parent=59 // pred_fallthru
          _
        %s397 = sand.u32 %s31, 1
        %s398 = scalar_lea.sflag [#allocation6], %s397
        %s399 = sand.u32 %s65, 1
        %s400 = smul.addr %s399, 8
        %s401 = scalar_lea.vmem [#allocation5], %s400
        // Predicated region
        $region65: #{tpu_custom_call.1} parent=59 // pred_check
          %p402 = pneg %p78
        $region66: #{tpu_custom_call.1} parent=59 // pred_check_branch
          %404 = sbr.rel (%p402) target = $region68
        $region67: #{tpu_custom_call.1} parent=59 // pred_region
          %405 = dma.done %s398, 128
        $region68: #{tpu_custom_call.1} parent=59 // pred_fallthru
          _
        // Predicated region
        $region69: #{tpu_custom_call.1} parent=59 // pred_check
          %p406 = pneg %p99
        $region70: #{tpu_custom_call.1} parent=59 // pred_check_branch
          %408 = sbr.rel (%p406) target = $region72
        $region71: #{tpu_custom_call.1} parent=59 // pred_region
          %409 = dma.done [#allocation6], 512
        $region72: #{tpu_custom_call.1} parent=59 // pred_fallthru
          _
        // Predicated region
        $region73: #{tpu_custom_call.1} parent=59 // pred_check
          %p410 = pneg %p120
        $region74: #{tpu_custom_call.1} parent=59 // pred_check_branch
          %412 = sbr.rel (%p410) target = $region76
        $region75: #{tpu_custom_call.1} parent=59 // pred_region
          %413 = dma.done [#allocation9], 512
        $region76: #{tpu_custom_call.1} parent=59 // pred_fallthru
          _
        // Predicated region
        $region77: #{tpu_custom_call.1} parent=59 // pred_check
          %p414 = pneg %p141
        $region78: #{tpu_custom_call.1} parent=59 // pred_check_branch
          %416 = sbr.rel (%p414) target = $region80
        $region79: #{tpu_custom_call.1} parent=59 // pred_region
          %417 = dma.done [#allocation9], 512
        $region80: #{tpu_custom_call.1} parent=59 // pred_fallthru
          _
        %s418 = sand.u32 %s39, 1
        %s419 = scalar_lea.sflag [#allocation3], %s418
        %s420 = sand.u32 %s39, 1
        %s421 = smul.addr %s420, 8
        %s422 = scalar_lea.vmem [#allocation2], %s421
        %p423 = pneg %p52
        %p424 = pneg %p49
        %s425 = sand.u32 %s31, 1
        %s426 = scalar_lea.sflag [#allocation6], %s425
        %s427 = sand.u32 %s65, 1
        %s428 = smul.addr %s427, 8
        %s429 = scalar_lea.vmem [#allocation5], %s428
        %p430 = pneg %p78
        %p431 = pneg %p75
        %p432 = pneg %p99
        %p433 = pneg %p96
        %p434 = pneg %p120
        %p435 = pneg %p117
        %p436 = pneg %p141
        %p437 = pneg %p138
        %p438 = pneg %p162
        %p439 = pneg %p159
        %p440 = pneg %p183
        %p441 = pneg %p180
        %p442 = pneg %p204
        %p443 = pneg %p201
        %p444 = pneg %p225
        %p445 = pneg %p222
        %p446 = pneg %p246
        %p447 = pneg %p243
        %p448 = pneg %p272
        %p449 = pneg %p269
        %s450 = sand.u32 %s259, 1
        %s451 = scalar_lea.sflag [#allocation4], %s450
        %s452 = sand.u32 %s259, 1
        %s453 = smul.addr %s452, 8
        %s454 = scalar_lea.vmem [#allocation11], %s453
        %v455 = vld [vmem:[%s392] sm:$0xff]
        %v456 = vld [vmem:[%s401] sm:$0xff]
        %v457 = vadd.f32 %v455, %v456
        %v458 = vld [vmem:[#allocation7] sm:$0xff]
        %v459 = vld [vmem:[#allocation7 + $0x8] sm:$0xff]
        %v460 = vld [vmem:[#allocation7 + $0x10] sm:$0xff]
        %v461 = vld [vmem:[#allocation7 + $0x18] sm:$0xff]
        %v462 = vld [vmem:[%s5] sm:$0x1]
        %v464 = vlaneseq
        %v465 = vshrl.u32 %v464, 7
        %v466 = vsub.s32 0, %v465
        %v467 = vrot.slane %v462, %v466
        %vm469 = vcmask 261120
        %v471 = vsel %vm469, %v457, 0
        %473 = vmatprep.subr.mxu0 0.0
        %474 = vmatpush1.msra.mxu0 %v458
        %475 = vmatprep.subr.mxu0 0.0
        %476 = vmatpush1.msra.mxu0 %v459
        %477 = vmatprep.subr.mxu0 0.0
        %478 = vmatpush1.msra.mxu0 %v460
        %479 = vmatprep.subr.mxu0 0.0
        %480 = vmatpush1.msra.mxu0 %v461
        %481 = vmatprep.subr.mxu0 0.0
        %482 = vmatpush1.msra.mxu0 0.0
        %483 = vmatprep.subr.mxu0 0.0
        %484 = vmatpush1.msra.mxu0 0.0
        %485 = vmatprep.subr.mxu0 0.0
        %486 = vmatpush1.msra.mxu0 0.0
        %487 = vmatprep.subr.mxu0 0.0
        %488 = vmatpush1.msra.mxu0 0.0
        %489 = vmatprep.subr.mxu0 0.0
        %490 = vmatpush1.msra.mxu0 0.0
        %491 = vmatprep.subr.mxu0 0.0
        %492 = vmatpush1.msra.mxu0 0.0
        %493 = vmatprep.subr.mxu0 0.0
        %494 = vmatpush1.msra.mxu0 0.0
        %495 = vmatprep.subr.mxu0 0.0
        %496 = vmatpush1.msra.mxu0 0.0
        %497 = vmatprep.subr.mxu0 0.0
        %498 = vmatpush1.msra.mxu0 0.0
        %499 = vmatprep.subr.mxu0 0.0
        %500 = vmatpush1.msra.mxu0 0.0
        %501 = vmatprep.subr.mxu0 0.0
        %502 = vmatpush1.msra.mxu0 0.0
        %503 = vmatprep.subr.mxu0 0.0
        %504 = vmatpush1.msra.mxu0 0.0
        %505 = vmatprep.subr.mxu0 0.0
        %506 = vmatpush1.msra.mxu0 0.0
        %507 = vmatprep.subr.mxu0 0.0
        %508 = vmatpush1.msra.mxu0 0.0
        %509 = vmatprep.subr.mxu0 0.0
        %510 = vmatpush1.msra.mxu0 0.0
        %511 = vmatprep.subr.mxu0 0.0
        %512 = vmatpush1.msra.mxu0 0.0
        %513 = vmatprep.subr.mxu0 0.0
        %514 = vmatpush1.msra.mxu0 0.0
        %515 = vmatprep.subr.mxu0 0.0
        %516 = vmatpush1.msra.mxu0 0.0
        %517 = vmatprep.subr.mxu0 0.0
        %518 = vmatpush1.msra.mxu0 0.0
        %519 = vmatprep.subr.mxu0 0.0
        %520 = vmatpush1.msra.mxu0 0.0
        %521 = vmatprep.subr.mxu0 0.0
        %522 = vmatpush1.msra.mxu0 0.0
        %523 = vmatprep.subr.mxu0 0.0
        %524 = vmatpush1.msra.mxu0 0.0
        %525 = vmatprep.subr.mxu0 0.0
        %526 = vmatpush1.msra.mxu0 0.0
        %527 = vmatprep.subr.mxu0 0.0
        %528 = vmatpush1.msra.mxu0 0.0
        %529 = vmatprep.subr.mxu0 0.0
        %530 = vmatpush1.msra.mxu0 0.0
        %531 = vmatprep.subr.mxu0 0.0
        %532 = vmatpush1.msra.mxu0 0.0
        %533 = vmatprep.subr.mxu0 0.0
        %534 = vmatpush1.msra.mxu0 0.0
        %535 = vmatprep.subr.mxu0 0.0
        %536 = vmatpush1.msra.mxu0 0.0
        %537 = vmatprep.mubr.f32.mxu0 0.0
        %538 = vmatmul.mubr.f32.gmra.mrb[0].mxu0 %v471
        %v539 = vpop.f32.mrb[0].mxu0
        %v540 = vadd.f32 %v467, %v539
        %v541 = vpop.f32.mrb[0].mxu0
        %542 = vdwg.mxu0
        %v543 = vld [vmem:[#allocation8] sm:$0xff]
        %v544 = vld [vmem:[#allocation8 + $0x8] sm:$0xff]
        %v545 = vld [vmem:[#allocation8 + $0x10] sm:$0xff]
        %v546 = vld [vmem:[#allocation8 + $0x18] sm:$0xff]
        %v547 = vld [vmem:[%s6] sm:$0x1]
        %v549 = vlaneseq
        %v550 = vshrl.u32 %v549, 7
        %v551 = vsub.s32 0, %v550
        %v552 = vrot.slane %v547, %v551
        %v555 = vsel %vm469, %v455, 0
        %557 = vmatprep.subr.mxu0 0.0
        %558 = vmatpush1.msra.mxu0 %v543
        %559 = vmatprep.subr.mxu0 0.0
        %560 = vmatpush1.msra.mxu0 %v544
        %561 = vmatprep.subr.mxu0 0.0
        %562 = vmatpush1.msra.mxu0 %v545
        %563 = vmatprep.subr.mxu0 0.0
        %564 = vmatpush1.msra.mxu0 %v546
        %565 = vmatprep.subr.mxu0 0.0
        %566 = vmatpush1.msra.mxu0 0.0
        %567 = vmatprep.subr.mxu0 0.0
        %568 = vmatpush1.msra.mxu0 0.0
        %569 = vmatprep.subr.mxu0 0.0
        %570 = vmatpush1.msra.mxu0 0.0
        %571 = vmatprep.subr.mxu0 0.0
        %572 = vmatpush1.msra.mxu0 0.0
        %573 = vmatprep.subr.mxu0 0.0
        %574 = vmatpush1.msra.mxu0 0.0
        %575 = vmatprep.subr.mxu0 0.0
        %576 = vmatpush1.msra.mxu0 0.0
        %577 = vmatprep.subr.mxu0 0.0
        %578 = vmatpush1.msra.mxu0 0.0
        %579 = vmatprep.subr.mxu0 0.0
        %580 = vmatpush1.msra.mxu0 0.0
        %581 = vmatprep.subr.mxu0 0.0
        %582 = vmatpush1.msra.mxu0 0.0
        %583 = vmatprep.subr.mxu0 0.0
        %584 = vmatpush1.msra.mxu0 0.0
        %585 = vmatprep.subr.mxu0 0.0
        %586 = vmatpush1.msra.mxu0 0.0
        %587 = vmatprep.subr.mxu0 0.0
        %588 = vmatpush1.msra.mxu0 0.0
        %589 = vmatprep.subr.mxu0 0.0
        %590 = vmatpush1.msra.mxu0 0.0
        %591 = vmatprep.subr.mxu0 0.0
        %592 = vmatpush1.msra.mxu0 0.0
        %593 = vmatprep.subr.mxu0 0.0
        %594 = vmatpush1.msra.mxu0 0.0
        %595 = vmatprep.subr.mxu0 0.0
        %596 = vmatpush1.msra.mxu0 0.0
        %597 = vmatprep.subr.mxu0 0.0
        %598 = vmatpush1.msra.mxu0 0.0
        %599 = vmatprep.subr.mxu0 0.0
        %600 = vmatpush1.msra.mxu0 0.0
        %601 = vmatprep.subr.mxu0 0.0
        %602 = vmatpush1.msra.mxu0 0.0
        %603 = vmatprep.subr.mxu0 0.0
        %604 = vmatpush1.msra.mxu0 0.0
        %605 = vmatprep.subr.mxu0 0.0
        %606 = vmatpush1.msra.mxu0 0.0
        %607 = vmatprep.subr.mxu0 0.0
        %608 = vmatpush1.msra.mxu0 0.0
        %609 = vmatprep.subr.mxu0 0.0
        %610 = vmatpush1.msra.mxu0 0.0
        %611 = vmatprep.subr.mxu0 0.0
        %612 = vmatpush1.msra.mxu0 0.0
        %613 = vmatprep.subr.mxu0 0.0
        %614 = vmatpush1.msra.mxu0 0.0
        %615 = vmatprep.subr.mxu0 0.0
        %616 = vmatpush1.msra.mxu0 0.0
        %617 = vmatprep.subr.mxu0 0.0
        %618 = vmatpush1.msra.mxu0 0.0
        %619 = vmatprep.subr.mxu0 0.0
        %620 = vmatpush1.msra.mxu0 0.0
        %621 = vmatprep.mubr.f32.mxu0 0.0
        %622 = vmatmul.mubr.f32.gmra.mrb[0].mxu0 %v555
        %v623 = vpop.f32.mrb[0].mxu0
        %v624 = vadd.f32 %v552, %v623
        %v625 = vpop.f32.mrb[0].mxu0
        %626 = vdwg.mxu0
        %628 = vrot.lane.b32.xlu0 %v540, 120
        %v629 = vpop.permute.xlu0 %628
        %631 = vrot.lane.b32.xlu0 %v540, 112
        %v632 = vpop.permute.xlu0 %631
        %634 = vrot.lane.b32.xlu0 %v540, 104
        %v635 = vpop.permute.xlu0 %634
        %v637 = vcombine.low %v540, %v632
        %v638 = vcombine.high %v540, %v632
        %v640 = vunpack.c.l.s4 1983009808
        %v641 = vunpack.c.0.s8 %v640
        %v642 = vlaneseq
        %v643 = vshrl.u32 %v642, 7
        %v644 = vsub.s32 %v641, %v643
        %v645 = vrot.slane %v637, %v644
        %v647 = vunpack.c.l.s4 1983009808
        %v648 = vunpack.c.0.s8 %v647
        %v649 = vlaneseq
        %v650 = vshrl.u32 %v649, 7
        %v651 = vsub.s32 %v648, %v650
        %v652 = vrot.slane %v638, %v651
        %v653 = vcombine.low %v629, %v635
        %v654 = vcombine.high %v629, %v635
        %v656 = vunpack.c.l.s4 1983009808
        %v657 = vunpack.c.0.s8 %v656
        %v658 = vlaneseq
        %v659 = vshrl.u32 %v658, 7
        %v660 = vsub.s32 %v657, %v659
        %v661 = vrot.slane %v653, %v660
        %v663 = vunpack.c.l.s4 1983009808
        %v664 = vunpack.c.0.s8 %v663
        %v665 = vlaneseq
        %v666 = vshrl.u32 %v665, 7
        %v667 = vsub.s32 %v664, %v666
        %v668 = vrot.slane %v654, %v667
        %v669 = vcombine.low %v645, %v661
        %v670 = vcombine.high %v645, %v661
        %v672 = vunpack.c.l.s4 1934713408
        %v673 = vunpack.c.0.s8 %v672
        %v674 = vlaneseq
        %v675 = vshrl.u32 %v674, 7
        %v676 = vsub.s32 %v673, %v675
        %v677 = vrot.slane %v669, %v676
        %v679 = vunpack.c.l.s4 1934713408
        %v680 = vunpack.c.0.s8 %v679
        %v681 = vlaneseq
        %v682 = vshrl.u32 %v681, 7
        %v683 = vsub.s32 %v680, %v682
        %v684 = vrot.slane %v670, %v683
        %v685 = vcombine.low %v652, %v668
        %v686 = vcombine.high %v652, %v668
        %v688 = vunpack.c.l.s4 1934713408
        %v689 = vunpack.c.0.s8 %v688
        %v690 = vlaneseq
        %v691 = vshrl.u32 %v690, 7
        %v692 = vsub.s32 %v689, %v691
        %v693 = vrot.slane %v685, %v692
        %v695 = vunpack.c.l.s4 1934713408
        %v696 = vunpack.c.0.s8 %v695
        %v697 = vlaneseq
        %v698 = vshrl.u32 %v697, 7
        %v699 = vsub.s32 %v696, %v698
        %v700 = vrot.slane %v686, %v699
        %v701 = vcombine.high %v677, 0.0
        %v702 = vcombine.high %v684, 0.0
        %v703 = vcombine.high %v693, 0.0
        %v704 = vcombine.high %v700, 0.0
        %v705 = vcombine.low %v677, %v684
        %v707 = vunpack.c.l.s4 1983009808
        %v708 = vunpack.c.0.s8 %v707
        %v709 = vlaneseq
        %v710 = vshrl.u32 %v709, 7
        %v711 = vsub.s32 %v708, %v710
        %v712 = vrot.slane %v705, %v711
        %v713 = vcombine.low %v701, %v702
        %v715 = vunpack.c.l.s4 1983009808
        %v716 = vunpack.c.0.s8 %v715
        %v717 = vlaneseq
        %v718 = vshrl.u32 %v717, 7
        %v719 = vsub.s32 %v716, %v718
        %v720 = vrot.slane %v713, %v719
        %v721 = vcombine.low %v693, %v700
        %v723 = vunpack.c.l.s4 1983009808
        %v724 = vunpack.c.0.s8 %v723
        %v725 = vlaneseq
        %v726 = vshrl.u32 %v725, 7
        %v727 = vsub.s32 %v724, %v726
        %v728 = vrot.slane %v721, %v727
        %v729 = vcombine.low %v703, %v704
        %v731 = vunpack.c.l.s4 1983009808
        %v732 = vunpack.c.0.s8 %v731
        %v733 = vlaneseq
        %v734 = vshrl.u32 %v733, 7
        %v735 = vsub.s32 %v732, %v734
        %v736 = vrot.slane %v729, %v735
        %v737 = vcombine.low %v712, %v720
        %v738 = vcombine.high %v712, %v720
        %v740 = vunpack.c.l.s4 1934713408
        %v741 = vunpack.c.0.s8 %v740
        %v742 = vlaneseq
        %v743 = vshrl.u32 %v742, 7
        %v744 = vsub.s32 %v741, %v743
        %v745 = vrot.slane %v737, %v744
        %v747 = vunpack.c.l.s4 1934713408
        %v748 = vunpack.c.0.s8 %v747
        %v749 = vlaneseq
        %v750 = vshrl.u32 %v749, 7
        %v751 = vsub.s32 %v748, %v750
        %v752 = vrot.slane %v738, %v751
        %v753 = vcombine.low %v728, %v736
        %v754 = vcombine.high %v728, %v736
        %v756 = vunpack.c.l.s4 1934713408
        %v757 = vunpack.c.0.s8 %v756
        %v758 = vlaneseq
        %v759 = vshrl.u32 %v758, 7
        %v760 = vsub.s32 %v757, %v759
        %v761 = vrot.slane %v753, %v760
        %v763 = vunpack.c.l.s4 1934713408
        %v764 = vunpack.c.0.s8 %v763
        %v765 = vlaneseq
        %v766 = vshrl.u32 %v765, 7
        %v767 = vsub.s32 %v764, %v766
        %v768 = vrot.slane %v754, %v767
        %v769 = vcombine.low %v745, %v761
        %v770 = vcombine.high %v745, %v761
        %v771 = vcombine.low %v752, %v768
        %v772 = vcombine.high %v752, %v768
        %773 = vrot.lane.b32.xlu0 %v540, 96
        %v774 = vpop.permute.xlu0 %773
        %775 = vrot.lane.b32.xlu0 %v629, 96
        %v776 = vpop.permute.xlu0 %775
        %777 = vrot.lane.b32.xlu0 %v632, 96
        %v778 = vpop.permute.xlu0 %777
        %779 = vrot.lane.b32.xlu0 %v635, 96
        %v780 = vpop.permute.xlu0 %779
        %v785 = vcombine.low %v774, %v778
        %v786 = vcombine.high %v774, %v778
        %v788 = vunpack.c.l.s4 1983009808
        %v789 = vunpack.c.0.s8 %v788
        %v790 = vlaneseq
        %v791 = vshrl.u32 %v790, 7
        %v792 = vsub.s32 %v789, %v791
        %v793 = vrot.slane %v785, %v792
        %v795 = vunpack.c.l.s4 1983009808
        %v796 = vunpack.c.0.s8 %v795
        %v797 = vlaneseq
        %v798 = vshrl.u32 %v797, 7
        %v799 = vsub.s32 %v796, %v798
        %v800 = vrot.slane %v786, %v799
        %v801 = vcombine.low %v776, %v780
        %v802 = vcombine.high %v776, %v780
        %v804 = vunpack.c.l.s4 1983009808
        %v805 = vunpack.c.0.s8 %v804
        %v806 = vlaneseq
        %v807 = vshrl.u32 %v806, 7
        %v808 = vsub.s32 %v805, %v807
        %v809 = vrot.slane %v801, %v808
        %v811 = vunpack.c.l.s4 1983009808
        %v812 = vunpack.c.0.s8 %v811
        %v813 = vlaneseq
        %v814 = vshrl.u32 %v813, 7
        %v815 = vsub.s32 %v812, %v814
        %v816 = vrot.slane %v802, %v815
        %v817 = vcombine.low %v793, %v809
        %v818 = vcombine.high %v793, %v809
        %v820 = vunpack.c.l.s4 1934713408
        %v821 = vunpack.c.0.s8 %v820
        %v822 = vlaneseq
        %v823 = vshrl.u32 %v822, 7
        %v824 = vsub.s32 %v821, %v823
        %v825 = vrot.slane %v817, %v824
        %v827 = vunpack.c.l.s4 1934713408
        %v828 = vunpack.c.0.s8 %v827
        %v829 = vlaneseq
        %v830 = vshrl.u32 %v829, 7
        %v831 = vsub.s32 %v828, %v830
        %v832 = vrot.slane %v818, %v831
        %v833 = vcombine.low %v800, %v816
        %v834 = vcombine.high %v800, %v816
        %v836 = vunpack.c.l.s4 1934713408
        %v837 = vunpack.c.0.s8 %v836
        %v838 = vlaneseq
        %v839 = vshrl.u32 %v838, 7
        %v840 = vsub.s32 %v837, %v839
        %v841 = vrot.slane %v833, %v840
        %v843 = vunpack.c.l.s4 1934713408
        %v844 = vunpack.c.0.s8 %v843
        %v845 = vlaneseq
        %v846 = vshrl.u32 %v845, 7
        %v847 = vsub.s32 %v844, %v846
        %v848 = vrot.slane %v834, %v847
        %v849 = vcombine.high %v825, 0.0
        %v850 = vcombine.high %v832, 0.0
        %v851 = vcombine.high %v841, 0.0
        %v852 = vcombine.high %v848, 0.0
        %v853 = vcombine.low %v825, %v832
        %v855 = vunpack.c.l.s4 1983009808
        %v856 = vunpack.c.0.s8 %v855
        %v857 = vlaneseq
        %v858 = vshrl.u32 %v857, 7
        %v859 = vsub.s32 %v856, %v858
        %v860 = vrot.slane %v853, %v859
        %v861 = vcombine.low %v849, %v850
        %v863 = vunpack.c.l.s4 1983009808
        %v864 = vunpack.c.0.s8 %v863
        %v865 = vlaneseq
        %v866 = vshrl.u32 %v865, 7
        %v867 = vsub.s32 %v864, %v866
        %v868 = vrot.slane %v861, %v867
        %v869 = vcombine.low %v841, %v848
        %v871 = vunpack.c.l.s4 1983009808
        %v872 = vunpack.c.0.s8 %v871
        %v873 = vlaneseq
        %v874 = vshrl.u32 %v873, 7
        %v875 = vsub.s32 %v872, %v874
        %v876 = vrot.slane %v869, %v875
        %v877 = vcombine.low %v851, %v852
        %v879 = vunpack.c.l.s4 1983009808
        %v880 = vunpack.c.0.s8 %v879
        %v881 = vlaneseq
        %v882 = vshrl.u32 %v881, 7
        %v883 = vsub.s32 %v880, %v882
        %v884 = vrot.slane %v877, %v883
        %v885 = vcombine.low %v860, %v868
        %v886 = vcombine.high %v860, %v868
        %v888 = vunpack.c.l.s4 1934713408
        %v889 = vunpack.c.0.s8 %v888
        %v890 = vlaneseq
        %v891 = vshrl.u32 %v890, 7
        %v892 = vsub.s32 %v889, %v891
        %v893 = vrot.slane %v885, %v892
        %v895 = vunpack.c.l.s4 1934713408
        %v896 = vunpack.c.0.s8 %v895
        %v897 = vlaneseq
        %v898 = vshrl.u32 %v897, 7
        %v899 = vsub.s32 %v896, %v898
        %v900 = vrot.slane %v886, %v899
        %v901 = vcombine.low %v876, %v884
        %v902 = vcombine.high %v876, %v884
        %v904 = vunpack.c.l.s4 1934713408
        %v905 = vunpack.c.0.s8 %v904
        %v906 = vlaneseq
        %v907 = vshrl.u32 %v906, 7
        %v908 = vsub.s32 %v905, %v907
        %v909 = vrot.slane %v901, %v908
        %v911 = vunpack.c.l.s4 1934713408
        %v912 = vunpack.c.0.s8 %v911
        %v913 = vlaneseq
        %v914 = vshrl.u32 %v913, 7
        %v915 = vsub.s32 %v912, %v914
        %v916 = vrot.slane %v902, %v915
        %v917 = vcombine.low %v893, %v909
        %v918 = vcombine.high %v893, %v909
        %v919 = vcombine.low %v900, %v916
        %v920 = vcombine.high %v900, %v916
        %922 = vrot.lane.b32.xlu0 %v624, 120
        %v923 = vpop.permute.xlu0 %922
        %925 = vrot.lane.b32.xlu0 %v624, 112
        %v926 = vpop.permute.xlu0 %925
        %928 = vrot.lane.b32.xlu0 %v624, 104
        %v929 = vpop.permute.xlu0 %928
        %v931 = vcombine.low %v624, %v926
        %v932 = vcombine.high %v624, %v926
        %v934 = vunpack.c.l.s4 1983009808
        %v935 = vunpack.c.0.s8 %v934
        %v936 = vlaneseq
        %v937 = vshrl.u32 %v936, 7
        %v938 = vsub.s32 %v935, %v937
        %v939 = vrot.slane %v931, %v938
        %v941 = vunpack.c.l.s4 1983009808
        %v942 = vunpack.c.0.s8 %v941
        %v943 = vlaneseq
        %v944 = vshrl.u32 %v943, 7
        %v945 = vsub.s32 %v942, %v944
        %v946 = vrot.slane %v932, %v945
        %v947 = vcombine.low %v923, %v929
        %v948 = vcombine.high %v923, %v929
        %v950 = vunpack.c.l.s4 1983009808
        %v951 = vunpack.c.0.s8 %v950
        %v952 = vlaneseq
        %v953 = vshrl.u32 %v952, 7
        %v954 = vsub.s32 %v951, %v953
        %v955 = vrot.slane %v947, %v954
        %v957 = vunpack.c.l.s4 1983009808
        %v958 = vunpack.c.0.s8 %v957
        %v959 = vlaneseq
        %v960 = vshrl.u32 %v959, 7
        %v961 = vsub.s32 %v958, %v960
        %v962 = vrot.slane %v948, %v961
        %v963 = vcombine.low %v939, %v955
        %v964 = vcombine.high %v939, %v955
        %v966 = vunpack.c.l.s4 1934713408
        %v967 = vunpack.c.0.s8 %v966
        %v968 = vlaneseq
        %v969 = vshrl.u32 %v968, 7
        %v970 = vsub.s32 %v967, %v969
        %v971 = vrot.slane %v963, %v970
        %v973 = vunpack.c.l.s4 1934713408
        %v974 = vunpack.c.0.s8 %v973
        %v975 = vlaneseq
        %v976 = vshrl.u32 %v975, 7
        %v977 = vsub.s32 %v974, %v976
        %v978 = vrot.slane %v964, %v977
        %v979 = vcombine.low %v946, %v962
        %v980 = vcombine.high %v946, %v962
        %v982 = vunpack.c.l.s4 1934713408
        %v983 = vunpack.c.0.s8 %v982
        %v984 = vlaneseq
        %v985 = vshrl.u32 %v984, 7
        %v986 = vsub.s32 %v983, %v985
        %v987 = vrot.slane %v979, %v986
        %v989 = vunpack.c.l.s4 1934713408
        %v990 = vunpack.c.0.s8 %v989
        %v991 = vlaneseq
        %v992 = vshrl.u32 %v991, 7
        %v993 = vsub.s32 %v990, %v992
        %v994 = vrot.slane %v980, %v993
        %v995 = vcombine.high %v971, 0.0
        %v996 = vcombine.high %v978, 0.0
        %v997 = vcombine.high %v987, 0.0
        %v998 = vcombine.high %v994, 0.0
        %v999 = vcombine.low %v971, %v978
        %v1001 = vunpack.c.l.s4 1983009808
        %v1002 = vunpack.c.0.s8 %v1001
        %v1003 = vlaneseq
        %v1004 = vshrl.u32 %v1003, 7
        %v1005 = vsub.s32 %v1002, %v1004
        %v1006 = vrot.slane %v999, %v1005
        %v1007 = vcombine.low %v995, %v996
        %v1009 = vunpack.c.l.s4 1983009808
        %v1010 = vunpack.c.0.s8 %v1009
        %v1011 = vlaneseq
        %v1012 = vshrl.u32 %v1011, 7
        %v1013 = vsub.s32 %v1010, %v1012
        %v1014 = vrot.slane %v1007, %v1013
        %v1015 = vcombine.low %v987, %v994
        %v1017 = vunpack.c.l.s4 1983009808
        %v1018 = vunpack.c.0.s8 %v1017
        %v1019 = vlaneseq
        %v1020 = vshrl.u32 %v1019, 7
        %v1021 = vsub.s32 %v1018, %v1020
        %v1022 = vrot.slane %v1015, %v1021
        %v1023 = vcombine.low %v997, %v998
        %v1025 = vunpack.c.l.s4 1983009808
        %v1026 = vunpack.c.0.s8 %v1025
        %v1027 = vlaneseq
        %v1028 = vshrl.u32 %v1027, 7
        %v1029 = vsub.s32 %v1026, %v1028
        %v1030 = vrot.slane %v1023, %v1029
        %v1031 = vcombine.low %v1006, %v1014
        %v1032 = vcombine.high %v1006, %v1014
        %v1034 = vunpack.c.l.s4 1934713408
        %v1035 = vunpack.c.0.s8 %v1034
        %v1036 = vlaneseq
        %v1037 = vshrl.u32 %v1036, 7
        %v1038 = vsub.s32 %v1035, %v1037
        %v1039 = vrot.slane %v1031, %v1038
        %v1041 = vunpack.c.l.s4 1934713408
        %v1042 = vunpack.c.0.s8 %v1041
        %v1043 = vlaneseq
        %v1044 = vshrl.u32 %v1043, 7
        %v1045 = vsub.s32 %v1042, %v1044
        %v1046 = vrot.slane %v1032, %v1045
        %v1047 = vcombine.low %v1022, %v1030
        %v1048 = vcombine.high %v1022, %v1030
        %v1050 = vunpack.c.l.s4 1934713408
        %v1051 = vunpack.c.0.s8 %v1050
        %v1052 = vlaneseq
        %v1053 = vshrl.u32 %v1052, 7
        %v1054 = vsub.s32 %v1051, %v1053
        %v1055 = vrot.slane %v1047, %v1054
        %v1057 = vunpack.c.l.s4 1934713408
        %v1058 = vunpack.c.0.s8 %v1057
        %v1059 = vlaneseq
        %v1060 = vshrl.u32 %v1059, 7
        %v1061 = vsub.s32 %v1058, %v1060
        %v1062 = vrot.slane %v1048, %v1061
        %v1063 = vcombine.low %v1039, %v1055
        %v1064 = vcombine.high %v1039, %v1055
        %v1065 = vcombine.low %v1046, %v1062
        %v1066 = vcombine.high %v1046, %v1062
        %vm1067 = vcmask 64512
        %v1069 = vsel %vm1067, %v769, 0
        %v1072 = vsel %vm1067, %v917, 0
        %1074 = vmatprep.subr.mxu0 0.0
        %1075 = vmatpush1.xpose.msra.mxu0 %v1072
        %1076 = vmatprep.subr.mxu0 0.0
        %1077 = vmatpush1.xpose.msra.mxu0 0.0
        %1078 = vmatprep.subr.mxu0 0.0
        %1079 = vmatpush1.xpose.msra.mxu0 0.0
        %1080 = vmatprep.subr.mxu0 0.0
        %1081 = vmatpush1.xpose.msra.mxu0 0.0
        %1082 = vmatprep.subr.mxu0 0.0
        %1083 = vmatpush1.xpose.msra.mxu0 0.0
        %1084 = vmatprep.subr.mxu0 0.0
        %1085 = vmatpush1.xpose.msra.mxu0 0.0
        %1086 = vmatprep.subr.mxu0 0.0
        %1087 = vmatpush1.xpose.msra.mxu0 0.0
        %1088 = vmatprep.subr.mxu0 0.0
        %1089 = vmatpush1.xpose.msra.mxu0 0.0
        %1090 = vmatprep.subr.mxu0 0.0
        %1091 = vmatpush1.xpose.msra.mxu0 0.0
        %1092 = vmatprep.subr.mxu0 0.0
        %1093 = vmatpush1.xpose.msra.mxu0 0.0
        %1094 = vmatprep.subr.mxu0 0.0
        %1095 = vmatpush1.xpose.msra.mxu0 0.0
        %1096 = vmatprep.subr.mxu0 0.0
        %1097 = vmatpush1.xpose.msra.mxu0 0.0
        %1098 = vmatprep.subr.mxu0 0.0
        %1099 = vmatpush1.xpose.msra.mxu0 0.0
        %1100 = vmatprep.subr.mxu0 0.0
        %1101 = vmatpush1.xpose.msra.mxu0 0.0
        %1102 = vmatprep.subr.mxu0 0.0
        %1103 = vmatpush1.xpose.msra.mxu0 0.0
        %1104 = vmatprep.subr.mxu0 0.0
        %1105 = vmatpush1.xpose.msra.mxu0 0.0
        %1106 = vmatprep.subr.mxu0 0.0
        %1107 = vmatpush1.xpose.msra.mxu0 0.0
        %1108 = vmatprep.subr.mxu0 0.0
        %1109 = vmatpush1.xpose.msra.mxu0 0.0
        %1110 = vmatprep.subr.mxu0 0.0
        %1111 = vmatpush1.xpose.msra.mxu0 0.0
        %1112 = vmatprep.subr.mxu0 0.0
        %1113 = vmatpush1.xpose.msra.mxu0 0.0
        %1114 = vmatprep.subr.mxu0 0.0
        %1115 = vmatpush1.xpose.msra.mxu0 0.0
        %1116 = vmatprep.subr.mxu0 0.0
        %1117 = vmatpush1.xpose.msra.mxu0 0.0
        %1118 = vmatprep.subr.mxu0 0.0
        %1119 = vmatpush1.xpose.msra.mxu0 0.0
        %1120 = vmatprep.subr.mxu0 0.0
        %1121 = vmatpush1.xpose.msra.mxu0 0.0
        %1122 = vmatprep.subr.mxu0 0.0
        %1123 = vmatpush1.xpose.msra.mxu0 0.0
        %1124 = vmatprep.subr.mxu0 0.0
        %1125 = vmatpush1.xpose.msra.mxu0 0.0
        %1126 = vmatprep.subr.mxu0 0.0
        %1127 = vmatpush1.xpose.msra.mxu0 0.0
        %1128 = vmatprep.subr.mxu0 0.0
        %1129 = vmatpush1.xpose.msra.mxu0 0.0
        %1130 = vmatprep.subr.mxu0 0.0
        %1131 = vmatpush1.xpose.msra.mxu0 0.0
        %1132 = vmatprep.subr.mxu0 0.0
        %1133 = vmatpush1.xpose.msra.mxu0 0.0
        %1134 = vmatprep.subr.mxu0 0.0
        %1135 = vmatpush1.xpose.msra.mxu0 0.0
        %1136 = vmatprep.subr.mxu0 0.0
        %1137 = vmatpush1.xpose.msra.mxu0 0.0
        %1138 = vmatprep.mubr.f32.mxu0 0.0
        %1139 = vmatmul.mubr.f32.gmra.mrb[0].mxu0 %v1069
        %v1140 = vpop.f32.mrb[0].mxu0
        %v1141 = vadd.f32 0.0, %v1140
        %v1142 = vpop.f32.mrb[0].mxu0
        %1143 = vdwg.mxu0
        %v1145 = vsel %vm1067, %v770, 0
        %v1148 = vsel %vm1067, %v918, 0
        %1150 = vmatprep.subr.mxu0 0.0
        %1151 = vmatpush1.xpose.msra.mxu0 %v1148
        %1152 = vmatprep.subr.mxu0 0.0
        %1153 = vmatpush1.xpose.msra.mxu0 0.0
        %1154 = vmatprep.subr.mxu0 0.0
        %1155 = vmatpush1.xpose.msra.mxu0 0.0
        %1156 = vmatprep.subr.mxu0 0.0
        %1157 = vmatpush1.xpose.msra.mxu0 0.0
        %1158 = vmatprep.subr.mxu0 0.0
        %1159 = vmatpush1.xpose.msra.mxu0 0.0
        %1160 = vmatprep.subr.mxu0 0.0
        %1161 = vmatpush1.xpose.msra.mxu0 0.0
        %1162 = vmatprep.subr.mxu0 0.0
        %1163 = vmatpush1.xpose.msra.mxu0 0.0
        %1164 = vmatprep.subr.mxu0 0.0
        %1165 = vmatpush1.xpose.msra.mxu0 0.0
        %1166 = vmatprep.subr.mxu0 0.0
        %1167 = vmatpush1.xpose.msra.mxu0 0.0
        %1168 = vmatprep.subr.mxu0 0.0
        %1169 = vmatpush1.xpose.msra.mxu0 0.0
        %1170 = vmatprep.subr.mxu0 0.0
        %1171 = vmatpush1.xpose.msra.mxu0 0.0
        %1172 = vmatprep.subr.mxu0 0.0
        %1173 = vmatpush1.xpose.msra.mxu0 0.0
        %1174 = vmatprep.subr.mxu0 0.0
        %1175 = vmatpush1.xpose.msra.mxu0 0.0
        %1176 = vmatprep.subr.mxu0 0.0
        %1177 = vmatpush1.xpose.msra.mxu0 0.0
        %1178 = vmatprep.subr.mxu0 0.0
        %1179 = vmatpush1.xpose.msra.mxu0 0.0
        %1180 = vmatprep.subr.mxu0 0.0
        %1181 = vmatpush1.xpose.msra.mxu0 0.0
        %1182 = vmatprep.subr.mxu0 0.0
        %1183 = vmatpush1.xpose.msra.mxu0 0.0
        %1184 = vmatprep.subr.mxu0 0.0
        %1185 = vmatpush1.xpose.msra.mxu0 0.0
        %1186 = vmatprep.subr.mxu0 0.0
        %1187 = vmatpush1.xpose.msra.mxu0 0.0
        %1188 = vmatprep.subr.mxu0 0.0
        %1189 = vmatpush1.xpose.msra.mxu0 0.0
        %1190 = vmatprep.subr.mxu0 0.0
        %1191 = vmatpush1.xpose.msra.mxu0 0.0
        %1192 = vmatprep.subr.mxu0 0.0
        %1193 = vmatpush1.xpose.msra.mxu0 0.0
        %1194 = vmatprep.subr.mxu0 0.0
        %1195 = vmatpush1.xpose.msra.mxu0 0.0
        %1196 = vmatprep.subr.mxu0 0.0
        %1197 = vmatpush1.xpose.msra.mxu0 0.0
        %1198 = vmatprep.subr.mxu0 0.0
        %1199 = vmatpush1.xpose.msra.mxu0 0.0
        %1200 = vmatprep.subr.mxu0 0.0
        %1201 = vmatpush1.xpose.msra.mxu0 0.0
        %1202 = vmatprep.subr.mxu0 0.0
        %1203 = vmatpush1.xpose.msra.mxu0 0.0
        %1204 = vmatprep.subr.mxu0 0.0
        %1205 = vmatpush1.xpose.msra.mxu0 0.0
        %1206 = vmatprep.subr.mxu0 0.0
        %1207 = vmatpush1.xpose.msra.mxu0 0.0
        %1208 = vmatprep.subr.mxu0 0.0
        %1209 = vmatpush1.xpose.msra.mxu0 0.0
        %1210 = vmatprep.subr.mxu0 0.0
        %1211 = vmatpush1.xpose.msra.mxu0 0.0
        %1212 = vmatprep.subr.mxu0 0.0
        %1213 = vmatpush1.xpose.msra.mxu0 0.0
        %1214 = vmatprep.mubr.f32.mxu0 0.0
        %1215 = vmatmul.mubr.f32.gmra.mrb[0].mxu0 %v1145
        %v1216 = vpop.f32.mrb[0].mxu0
        %v1217 = vadd.f32 0.0, %v1216
        %v1218 = vpop.f32.mrb[0].mxu0
        %1219 = vdwg.mxu0
        %v1221 = vsel %vm1067, %v771, 0
        %v1224 = vsel %vm1067, %v919, 0
        %1226 = vmatprep.subr.mxu0 0.0
        %1227 = vmatpush1.xpose.msra.mxu0 %v1224
        %1228 = vmatprep.subr.mxu0 0.0
        %1229 = vmatpush1.xpose.msra.mxu0 0.0
        %1230 = vmatprep.subr.mxu0 0.0
        %1231 = vmatpush1.xpose.msra.mxu0 0.0
        %1232 = vmatprep.subr.mxu0 0.0
        %1233 = vmatpush1.xpose.msra.mxu0 0.0
        %1234 = vmatprep.subr.mxu0 0.0
        %1235 = vmatpush1.xpose.msra.mxu0 0.0
        %1236 = vmatprep.subr.mxu0 0.0
        %1237 = vmatpush1.xpose.msra.mxu0 0.0
        %1238 = vmatprep.subr.mxu0 0.0
        %1239 = vmatpush1.xpose.msra.mxu0 0.0
        %1240 = vmatprep.subr.mxu0 0.0
        %1241 = vmatpush1.xpose.msra.mxu0 0.0
        %1242 = vmatprep.subr.mxu0 0.0
        %1243 = vmatpush1.xpose.msra.mxu0 0.0
        %1244 = vmatprep.subr.mxu0 0.0
        %1245 = vmatpush1.xpose.msra.mxu0 0.0
        %1246 = vmatprep.subr.mxu0 0.0
        %1247 = vmatpush1.xpose.msra.mxu0 0.0
        %1248 = vmatprep.subr.mxu0 0.0
        %1249 = vmatpush1.xpose.msra.mxu0 0.0
        %1250 = vmatprep.subr.mxu0 0.0
        %1251 = vmatpush1.xpose.msra.mxu0 0.0
        %1252 = vmatprep.subr.mxu0 0.0
        %1253 = vmatpush1.xpose.msra.mxu0 0.0
        %1254 = vmatprep.subr.mxu0 0.0
        %1255 = vmatpush1.xpose.msra.mxu0 0.0
        %1256 = vmatprep.subr.mxu0 0.0
        %1257 = vmatpush1.xpose.msra.mxu0 0.0
        %1258 = vmatprep.subr.mxu0 0.0
        %1259 = vmatpush1.xpose.msra.mxu0 0.0
        %1260 = vmatprep.subr.mxu0 0.0
        %1261 = vmatpush1.xpose.msra.mxu0 0.0
        %1262 = vmatprep.subr.mxu0 0.0
        %1263 = vmatpush1.xpose.msra.mxu0 0.0
        %1264 = vmatprep.subr.mxu0 0.0
        %1265 = vmatpush1.xpose.msra.mxu0 0.0
        %1266 = vmatprep.subr.mxu0 0.0
        %1267 = vmatpush1.xpose.msra.mxu0 0.0
        %1268 = vmatprep.subr.mxu0 0.0
        %1269 = vmatpush1.xpose.msra.mxu0 0.0
        %1270 = vmatprep.subr.mxu0 0.0
        %1271 = vmatpush1.xpose.msra.mxu0 0.0
        %1272 = vmatprep.subr.mxu0 0.0
        %1273 = vmatpush1.xpose.msra.mxu0 0.0
        %1274 = vmatprep.subr.mxu0 0.0
        %1275 = vmatpush1.xpose.msra.mxu0 0.0
        %1276 = vmatprep.subr.mxu0 0.0
        %1277 = vmatpush1.xpose.msra.mxu0 0.0
        %1278 = vmatprep.subr.mxu0 0.0
        %1279 = vmatpush1.xpose.msra.mxu0 0.0
        %1280 = vmatprep.subr.mxu0 0.0
        %1281 = vmatpush1.xpose.msra.mxu0 0.0
        %1282 = vmatprep.subr.mxu0 0.0
        %1283 = vmatpush1.xpose.msra.mxu0 0.0
        %1284 = vmatprep.subr.mxu0 0.0
        %1285 = vmatpush1.xpose.msra.mxu0 0.0
        %1286 = vmatprep.subr.mxu0 0.0
        %1287 = vmatpush1.xpose.msra.mxu0 0.0
        %1288 = vmatprep.subr.mxu0 0.0
        %1289 = vmatpush1.xpose.msra.mxu0 0.0
        %1290 = vmatprep.mubr.f32.mxu0 0.0
        %1291 = vmatmul.mubr.f32.gmra.mrb[0].mxu0 %v1221
        %v1292 = vpop.f32.mrb[0].mxu0
        %v1293 = vadd.f32 0.0, %v1292
        %v1294 = vpop.f32.mrb[0].mxu0
        %1295 = vdwg.mxu0
        %v1297 = vsel %vm1067, %v772, 0
        %v1300 = vsel %vm1067, %v920, 0
        %1302 = vmatprep.subr.mxu0 0.0
        %1303 = vmatpush1.xpose.msra.mxu0 %v1300
        %1304 = vmatprep.subr.mxu0 0.0
        %1305 = vmatpush1.xpose.msra.mxu0 0.0
        %1306 = vmatprep.subr.mxu0 0.0
        %1307 = vmatpush1.xpose.msra.mxu0 0.0
        %1308 = vmatprep.subr.mxu0 0.0
        %1309 = vmatpush1.xpose.msra.mxu0 0.0
        %1310 = vmatprep.subr.mxu0 0.0
        %1311 = vmatpush1.xpose.msra.mxu0 0.0
        %1312 = vmatprep.subr.mxu0 0.0
        %1313 = vmatpush1.xpose.msra.mxu0 0.0
        %1314 = vmatprep.subr.mxu0 0.0
        %1315 = vmatpush1.xpose.msra.mxu0 0.0
        %1316 = vmatprep.subr.mxu0 0.0
        %1317 = vmatpush1.xpose.msra.mxu0 0.0
        %1318 = vmatprep.subr.mxu0 0.0
        %1319 = vmatpush1.xpose.msra.mxu0 0.0
        %1320 = vmatprep.subr.mxu0 0.0
        %1321 = vmatpush1.xpose.msra.mxu0 0.0
        %1322 = vmatprep.subr.mxu0 0.0
        %1323 = vmatpush1.xpose.msra.mxu0 0.0
        %1324 = vmatprep.subr.mxu0 0.0
        %1325 = vmatpush1.xpose.msra.mxu0 0.0
        %1326 = vmatprep.subr.mxu0 0.0
        %1327 = vmatpush1.xpose.msra.mxu0 0.0
        %1328 = vmatprep.subr.mxu0 0.0
        %1329 = vmatpush1.xpose.msra.mxu0 0.0
        %1330 = vmatprep.subr.mxu0 0.0
        %1331 = vmatpush1.xpose.msra.mxu0 0.0
        %1332 = vmatprep.subr.mxu0 0.0
        %1333 = vmatpush1.xpose.msra.mxu0 0.0
        %1334 = vmatprep.subr.mxu0 0.0
        %1335 = vmatpush1.xpose.msra.mxu0 0.0
        %1336 = vmatprep.subr.mxu0 0.0
        %1337 = vmatpush1.xpose.msra.mxu0 0.0
        %1338 = vmatprep.subr.mxu0 0.0
        %1339 = vmatpush1.xpose.msra.mxu0 0.0
        %1340 = vmatprep.subr.mxu0 0.0
        %1341 = vmatpush1.xpose.msra.mxu0 0.0
        %1342 = vmatprep.subr.mxu0 0.0
        %1343 = vmatpush1.xpose.msra.mxu0 0.0
        %1344 = vmatprep.subr.mxu0 0.0
        %1345 = vmatpush1.xpose.msra.mxu0 0.0
        %1346 = vmatprep.subr.mxu0 0.0
        %1347 = vmatpush1.xpose.msra.mxu0 0.0
        %1348 = vmatprep.subr.mxu0 0.0
        %1349 = vmatpush1.xpose.msra.mxu0 0.0
        %1350 = vmatprep.subr.mxu0 0.0
        %1351 = vmatpush1.xpose.msra.mxu0 0.0
        %1352 = vmatprep.subr.mxu0 0.0
        %1353 = vmatpush1.xpose.msra.mxu0 0.0
        %1354 = vmatprep.subr.mxu0 0.0
        %1355 = vmatpush1.xpose.msra.mxu0 0.0
        %1356 = vmatprep.subr.mxu0 0.0
        %1357 = vmatpush1.xpose.msra.mxu0 0.0
        %1358 = vmatprep.subr.mxu0 0.0
        %1359 = vmatpush1.xpose.msra.mxu0 0.0
        %1360 = vmatprep.subr.mxu0 0.0
        %1361 = vmatpush1.xpose.msra.mxu0 0.0
        %1362 = vmatprep.subr.mxu0 0.0
        %1363 = vmatpush1.xpose.msra.mxu0 0.0
        %1364 = vmatprep.subr.mxu0 0.0
        %1365 = vmatpush1.xpose.msra.mxu0 0.0
        %1366 = vmatprep.mubr.f32.mxu0 0.0
        %1367 = vmatmul.mubr.f32.gmra.mrb[0].mxu0 %v1297
        %v1368 = vpop.f32.mrb[0].mxu0
        %v1369 = vadd.f32 0.0, %v1368
        %v1370 = vpop.f32.mrb[0].mxu0
        %1371 = vdwg.mxu0
        %v1372 = vsel %vm1067, %v1141, -inf
        %1373 = vmax.xlane.f32.xlu0 %v1372
        %v1374 = vpop.xlane.xlu0 %1373
        %v1375 = vsel %vm1067, %v1217, -inf
        %1376 = vmax.xlane.f32.xlu0 %v1375
        %v1377 = vpop.xlane.xlu0 %1376
        %v1378 = vsel %vm1067, %v1293, -inf
        %1379 = vmax.xlane.f32.xlu0 %v1378
        %v1380 = vpop.xlane.xlu0 %1379
        %v1381 = vsel %vm1067, %v1369, -inf
        %1382 = vmax.xlane.f32.xlu0 %v1381
        %v1383 = vpop.xlane.xlu0 %1382
        %v1384 = vsub.f32 %v1141, %v1374
        %v1385 = vsub.f32 %v1217, %v1377
        %v1386 = vsub.f32 %v1293, %v1380
        %v1387 = vsub.f32 %v1369, %v1383
        %v1388 = vmul.f32 %v1384, 1.442695
        %v1389 = vpow.pop %v1388
        %v1390 = vmul.f32 %v1385, 1.442695
        %v1391 = vpow.pop %v1390
        %v1392 = vmul.f32 %v1386, 1.442695
        %v1393 = vpow.pop %v1392
        %v1394 = vmul.f32 %v1387, 1.442695
        %v1395 = vpow.pop %v1394
        %v1396 = vsel %vm1067, %v1389, 0.0
        %1397 = vadd.xlane.f32.xlu0 %v1396
        %v1398 = vpop.xlane.xlu0 %1397
        %v1399 = vsel %vm1067, %v1391, 0.0
        %1400 = vadd.xlane.f32.xlu0 %v1399
        %v1401 = vpop.xlane.xlu0 %1400
        %v1402 = vsel %vm1067, %v1393, 0.0
        %1403 = vadd.xlane.f32.xlu0 %v1402
        %v1404 = vpop.xlane.xlu0 %1403
        %v1405 = vsel %vm1067, %v1395, 0.0
        %1406 = vadd.xlane.f32.xlu0 %v1405
        %v1407 = vpop.xlane.xlu0 %1406
        %v1408 = vrcp.pop %v1398
        %v1409 = vmul.f32 %v1389, %v1408
        %v1410 = vrcp.pop %v1401
        %v1411 = vmul.f32 %v1391, %v1410
        %v1412 = vrcp.pop %v1404
        %v1413 = vmul.f32 %v1393, %v1412
        %v1414 = vrcp.pop %v1407
        %v1415 = vmul.f32 %v1395, %v1414
        %v1417 = vsel %vm1067, %v1409, 0
        %1419 = vmatprep.subr.mxu0 0.0
        %1420 = vmatpush1.msra.mxu0 %v1063
        %1421 = vmatprep.subr.mxu0 0.0
        %1422 = vmatpush1.msra.mxu0 0.0
        %1423 = vmatprep.subr.mxu0 0.0
        %1424 = vmatpush1.msra.mxu0 0.0
        %1425 = vmatprep.subr.mxu0 0.0
        %1426 = vmatpush1.msra.mxu0 0.0
        %1427 = vmatprep.subr.mxu0 0.0
        %1428 = vmatpush1.msra.mxu0 0.0
        %1429 = vmatprep.subr.mxu0 0.0
        %1430 = vmatpush1.msra.mxu0 0.0
        %1431 = vmatprep.subr.mxu0 0.0
        %1432 = vmatpush1.msra.mxu0 0.0
        %1433 = vmatprep.subr.mxu0 0.0
        %1434 = vmatpush1.msra.mxu0 0.0
        %1435 = vmatprep.subr.mxu0 0.0
        %1436 = vmatpush1.msra.mxu0 0.0
        %1437 = vmatprep.subr.mxu0 0.0
        %1438 = vmatpush1.msra.mxu0 0.0
        %1439 = vmatprep.subr.mxu0 0.0
        %1440 = vmatpush1.msra.mxu0 0.0
        %1441 = vmatprep.subr.mxu0 0.0
        %1442 = vmatpush1.msra.mxu0 0.0
        %1443 = vmatprep.subr.mxu0 0.0
        %1444 = vmatpush1.msra.mxu0 0.0
        %1445 = vmatprep.subr.mxu0 0.0
        %1446 = vmatpush1.msra.mxu0 0.0
        %1447 = vmatprep.subr.mxu0 0.0
        %1448 = vmatpush1.msra.mxu0 0.0
        %1449 = vmatprep.subr.mxu0 0.0
        %1450 = vmatpush1.msra.mxu0 0.0
        %1451 = vmatprep.subr.mxu0 0.0
        %1452 = vmatpush1.msra.mxu0 0.0
        %1453 = vmatprep.subr.mxu0 0.0
        %1454 = vmatpush1.msra.mxu0 0.0
        %1455 = vmatprep.subr.mxu0 0.0
        %1456 = vmatpush1.msra.mxu0 0.0
        %1457 = vmatprep.subr.mxu0 0.0
        %1458 = vmatpush1.msra.mxu0 0.0
        %1459 = vmatprep.subr.mxu0 0.0
        %1460 = vmatpush1.msra.mxu0 0.0
        %1461 = vmatprep.subr.mxu0 0.0
        %1462 = vmatpush1.msra.mxu0 0.0
        %1463 = vmatprep.subr.mxu0 0.0
        %1464 = vmatpush1.msra.mxu0 0.0
        %1465 = vmatprep.subr.mxu0 0.0
        %1466 = vmatpush1.msra.mxu0 0.0
        %1467 = vmatprep.subr.mxu0 0.0
        %1468 = vmatpush1.msra.mxu0 0.0
        %1469 = vmatprep.subr.mxu0 0.0
        %1470 = vmatpush1.msra.mxu0 0.0
        %1471 = vmatprep.subr.mxu0 0.0
        %1472 = vmatpush1.msra.mxu0 0.0
        %1473 = vmatprep.subr.mxu0 0.0
        %1474 = vmatpush1.msra.mxu0 0.0
        %1475 = vmatprep.subr.mxu0 0.0
        %1476 = vmatpush1.msra.mxu0 0.0
        %1477 = vmatprep.subr.mxu0 0.0
        %1478 = vmatpush1.msra.mxu0 0.0
        %1479 = vmatprep.subr.mxu0 0.0
        %1480 = vmatpush1.msra.mxu0 0.0
        %1481 = vmatprep.subr.mxu0 0.0
        %1482 = vmatpush1.msra.mxu0 0.0
        %1483 = vmatprep.mubr.f32.mxu0 0.0
        %1484 = vmatmul.mubr.f32.gmra.mrb[0].mxu0 %v1417
        %v1485 = vpop.f32.mrb[0].mxu0
        %v1486 = vadd.f32 0.0, %v1485
        %v1487 = vpop.f32.mrb[0].mxu0
        %1488 = vdwg.mxu0
        %v1490 = vsel %vm1067, %v1411, 0
        %1492 = vmatprep.subr.mxu0 0.0
        %1493 = vmatpush1.msra.mxu0 %v1064
        %1494 = vmatprep.subr.mxu0 0.0
        %1495 = vmatpush1.msra.mxu0 0.0
        %1496 = vmatprep.subr.mxu0 0.0
        %1497 = vmatpush1.msra.mxu0 0.0
        %1498 = vmatprep.subr.mxu0 0.0
        %1499 = vmatpush1.msra.mxu0 0.0
        %1500 = vmatprep.subr.mxu0 0.0
        %1501 = vmatpush1.msra.mxu0 0.0
        %1502 = vmatprep.subr.mxu0 0.0
        %1503 = vmatpush1.msra.mxu0 0.0
        %1504 = vmatprep.subr.mxu0 0.0
        %1505 = vmatpush1.msra.mxu0 0.0
        %1506 = vmatprep.subr.mxu0 0.0
        %1507 = vmatpush1.msra.mxu0 0.0
        %1508 = vmatprep.subr.mxu0 0.0
        %1509 = vmatpush1.msra.mxu0 0.0
        %1510 = vmatprep.subr.mxu0 0.0
        %1511 = vmatpush1.msra.mxu0 0.0
        %1512 = vmatprep.subr.mxu0 0.0
        %1513 = vmatpush1.msra.mxu0 0.0
        %1514 = vmatprep.subr.mxu0 0.0
        %1515 = vmatpush1.msra.mxu0 0.0
        %1516 = vmatprep.subr.mxu0 0.0
        %1517 = vmatpush1.msra.mxu0 0.0
        %1518 = vmatprep.subr.mxu0 0.0
        %1519 = vmatpush1.msra.mxu0 0.0
        %1520 = vmatprep.subr.mxu0 0.0
        %1521 = vmatpush1.msra.mxu0 0.0
        %1522 = vmatprep.subr.mxu0 0.0
        %1523 = vmatpush1.msra.mxu0 0.0
        %1524 = vmatprep.subr.mxu0 0.0
        %1525 = vmatpush1.msra.mxu0 0.0
        %1526 = vmatprep.subr.mxu0 0.0
        %1527 = vmatpush1.msra.mxu0 0.0
        %1528 = vmatprep.subr.mxu0 0.0
        %1529 = vmatpush1.msra.mxu0 0.0
        %1530 = vmatprep.subr.mxu0 0.0
        %1531 = vmatpush1.msra.mxu0 0.0
        %1532 = vmatprep.subr.mxu0 0.0
        %1533 = vmatpush1.msra.mxu0 0.0
        %1534 = vmatprep.subr.mxu0 0.0
        %1535 = vmatpush1.msra.mxu0 0.0
        %1536 = vmatprep.subr.mxu0 0.0
        %1537 = vmatpush1.msra.mxu0 0.0
        %1538 = vmatprep.subr.mxu0 0.0
        %1539 = vmatpush1.msra.mxu0 0.0
        %1540 = vmatprep.subr.mxu0 0.0
        %1541 = vmatpush1.msra.mxu0 0.0
        %1542 = vmatprep.subr.mxu0 0.0
        %1543 = vmatpush1.msra.mxu0 0.0
        %1544 = vmatprep.subr.mxu0 0.0
        %1545 = vmatpush1.msra.mxu0 0.0
        %1546 = vmatprep.subr.mxu0 0.0
        %1547 = vmatpush1.msra.mxu0 0.0
        %1548 = vmatprep.subr.mxu0 0.0
        %1549 = vmatpush1.msra.mxu0 0.0
        %1550 = vmatprep.subr.mxu0 0.0
        %1551 = vmatpush1.msra.mxu0 0.0
        %1552 = vmatprep.subr.mxu0 0.0
        %1553 = vmatpush1.msra.mxu0 0.0
        %1554 = vmatprep.subr.mxu0 0.0
        %1555 = vmatpush1.msra.mxu0 0.0
        %1556 = vmatprep.mubr.f32.mxu0 0.0
        %1557 = vmatmul.mubr.f32.gmra.mrb[0].mxu0 %v1490
        %v1558 = vpop.f32.mrb[0].mxu0
        %v1559 = vadd.f32 0.0, %v1558
        %v1560 = vpop.f32.mrb[0].mxu0
        %1561 = vdwg.mxu0
        %v1563 = vsel %vm1067, %v1413, 0
        %1565 = vmatprep.subr.mxu0 0.0
        %1566 = vmatpush1.msra.mxu0 %v1065
        %1567 = vmatprep.subr.mxu0 0.0
        %1568 = vmatpush1.msra.mxu0 0.0
        %1569 = vmatprep.subr.mxu0 0.0
        %1570 = vmatpush1.msra.mxu0 0.0
        %1571 = vmatprep.subr.mxu0 0.0
        %1572 = vmatpush1.msra.mxu0 0.0
        %1573 = vmatprep.subr.mxu0 0.0
        %1574 = vmatpush1.msra.mxu0 0.0
        %1575 = vmatprep.subr.mxu0 0.0
        %1576 = vmatpush1.msra.mxu0 0.0
        %1577 = vmatprep.subr.mxu0 0.0
        %1578 = vmatpush1.msra.mxu0 0.0
        %1579 = vmatprep.subr.mxu0 0.0
        %1580 = vmatpush1.msra.mxu0 0.0
        %1581 = vmatprep.subr.mxu0 0.0
        %1582 = vmatpush1.msra.mxu0 0.0
        %1583 = vmatprep.subr.mxu0 0.0
        %1584 = vmatpush1.msra.mxu0 0.0
        %1585 = vmatprep.subr.mxu0 0.0
        %1586 = vmatpush1.msra.mxu0 0.0
        %1587 = vmatprep.subr.mxu0 0.0
        %1588 = vmatpush1.msra.mxu0 0.0
        %1589 = vmatprep.subr.mxu0 0.0
        %1590 = vmatpush1.msra.mxu0 0.0
        %1591 = vmatprep.subr.mxu0 0.0
        %1592 = vmatpush1.msra.mxu0 0.0
        %1593 = vmatprep.subr.mxu0 0.0
        %1594 = vmatpush1.msra.mxu0 0.0
        %1595 = vmatprep.subr.mxu0 0.0
        %1596 = vmatpush1.msra.mxu0 0.0
        %1597 = vmatprep.subr.mxu0 0.0
        %1598 = vmatpush1.msra.mxu0 0.0
        %1599 = vmatprep.subr.mxu0 0.0
        %1600 = vmatpush1.msra.mxu0 0.0
        %1601 = vmatprep.subr.mxu0 0.0
        %1602 = vmatpush1.msra.mxu0 0.0
        %1603 = vmatprep.subr.mxu0 0.0
        %1604 = vmatpush1.msra.mxu0 0.0
        %1605 = vmatprep.subr.mxu0 0.0
        %1606 = vmatpush1.msra.mxu0 0.0
        %1607 = vmatprep.subr.mxu0 0.0
        %1608 = vmatpush1.msra.mxu0 0.0
        %1609 = vmatprep.subr.mxu0 0.0
        %1610 = vmatpush1.msra.mxu0 0.0
        %1611 = vmatprep.subr.mxu0 0.0
        %1612 = vmatpush1.msra.mxu0 0.0
        %1613 = vmatprep.subr.mxu0 0.0
        %1614 = vmatpush1.msra.mxu0 0.0
        %1615 = vmatprep.subr.mxu0 0.0
        %1616 = vmatpush1.msra.mxu0 0.0
        %1617 = vmatprep.subr.mxu0 0.0
        %1618 = vmatpush1.msra.mxu0 0.0
        %1619 = vmatprep.subr.mxu0 0.0
        %1620 = vmatpush1.msra.mxu0 0.0
        %1621 = vmatprep.subr.mxu0 0.0
        %1622 = vmatpush1.msra.mxu0 0.0
        %1623 = vmatprep.subr.mxu0 0.0
        %1624 = vmatpush1.msra.mxu0 0.0
        %1625 = vmatprep.subr.mxu0 0.0
        %1626 = vmatpush1.msra.mxu0 0.0
        %1627 = vmatprep.subr.mxu0 0.0
        %1628 = vmatpush1.msra.mxu0 0.0
        %1629 = vmatprep.mubr.f32.mxu0 0.0
        %1630 = vmatmul.mubr.f32.gmra.mrb[0].mxu0 %v1563
        %v1631 = vpop.f32.mrb[0].mxu0
        %v1632 = vadd.f32 0.0, %v1631
        %v1633 = vpop.f32.mrb[0].mxu0
        %1634 = vdwg.mxu0
        %v1636 = vsel %vm1067, %v1415, 0
        %1638 = vmatprep.subr.mxu0 0.0
        %1639 = vmatpush1.msra.mxu0 %v1066
        %1640 = vmatprep.subr.mxu0 0.0
        %1641 = vmatpush1.msra.mxu0 0.0
        %1642 = vmatprep.subr.mxu0 0.0
        %1643 = vmatpush1.msra.mxu0 0.0
        %1644 = vmatprep.subr.mxu0 0.0
        %1645 = vmatpush1.msra.mxu0 0.0
        %1646 = vmatprep.subr.mxu0 0.0
        %1647 = vmatpush1.msra.mxu0 0.0
        %1648 = vmatprep.subr.mxu0 0.0
        %1649 = vmatpush1.msra.mxu0 0.0
        %1650 = vmatprep.subr.mxu0 0.0
        %1651 = vmatpush1.msra.mxu0 0.0
        %1652 = vmatprep.subr.mxu0 0.0
        %1653 = vmatpush1.msra.mxu0 0.0
        %1654 = vmatprep.subr.mxu0 0.0
        %1655 = vmatpush1.msra.mxu0 0.0
        %1656 = vmatprep.subr.mxu0 0.0
        %1657 = vmatpush1.msra.mxu0 0.0
        %1658 = vmatprep.subr.mxu0 0.0
        %1659 = vmatpush1.msra.mxu0 0.0
        %1660 = vmatprep.subr.mxu0 0.0
        %1661 = vmatpush1.msra.mxu0 0.0
        %1662 = vmatprep.subr.mxu0 0.0
        %1663 = vmatpush1.msra.mxu0 0.0
        %1664 = vmatprep.subr.mxu0 0.0
        %1665 = vmatpush1.msra.mxu0 0.0
        %1666 = vmatprep.subr.mxu0 0.0
        %1667 = vmatpush1.msra.mxu0 0.0
        %1668 = vmatprep.subr.mxu0 0.0
        %1669 = vmatpush1.msra.mxu0 0.0
        %1670 = vmatprep.subr.mxu0 0.0
        %1671 = vmatpush1.msra.mxu0 0.0
        %1672 = vmatprep.subr.mxu0 0.0
        %1673 = vmatpush1.msra.mxu0 0.0
        %1674 = vmatprep.subr.mxu0 0.0
        %1675 = vmatpush1.msra.mxu0 0.0
        %1676 = vmatprep.subr.mxu0 0.0
        %1677 = vmatpush1.msra.mxu0 0.0
        %1678 = vmatprep.subr.mxu0 0.0
        %1679 = vmatpush1.msra.mxu0 0.0
        %1680 = vmatprep.subr.mxu0 0.0
        %1681 = vmatpush1.msra.mxu0 0.0
        %1682 = vmatprep.subr.mxu0 0.0
        %1683 = vmatpush1.msra.mxu0 0.0
        %1684 = vmatprep.subr.mxu0 0.0
        %1685 = vmatpush1.msra.mxu0 0.0
        %1686 = vmatprep.subr.mxu0 0.0
        %1687 = vmatpush1.msra.mxu0 0.0
        %1688 = vmatprep.subr.mxu0 0.0
        %1689 = vmatpush1.msra.mxu0 0.0
        %1690 = vmatprep.subr.mxu0 0.0
        %1691 = vmatpush1.msra.mxu0 0.0
        %1692 = vmatprep.subr.mxu0 0.0
        %1693 = vmatpush1.msra.mxu0 0.0
        %1694 = vmatprep.subr.mxu0 0.0
        %1695 = vmatpush1.msra.mxu0 0.0
        %1696 = vmatprep.subr.mxu0 0.0
        %1697 = vmatpush1.msra.mxu0 0.0
        %1698 = vmatprep.subr.mxu0 0.0
        %1699 = vmatpush1.msra.mxu0 0.0
        %1700 = vmatprep.subr.mxu0 0.0
        %1701 = vmatpush1.msra.mxu0 0.0
        %1702 = vmatprep.mubr.f32.mxu0 0.0
        %1703 = vmatmul.mubr.f32.gmra.mrb[0].mxu0 %v1636
        %v1704 = vpop.f32.mrb[0].mxu0
        %v1705 = vadd.f32 0.0, %v1704
        %v1706 = vpop.f32.mrb[0].mxu0
        %1707 = vdwg.mxu0
        %v1708 = vcombine.low %v1486, %v1632
        %v1709 = vcombine.high %v1486, %v1632
        %v1711 = vunpack.c.l.s4 1983009808
        %v1712 = vunpack.c.0.s8 %v1711
        %v1713 = vlaneseq
        %v1714 = vshrl.u32 %v1713, 7
        %v1715 = vsub.s32 %v1712, %v1714
        %v1716 = vrot.slane %v1708, %v1715
        %v1718 = vunpack.c.l.s4 1983009808
        %v1719 = vunpack.c.0.s8 %v1718
        %v1720 = vlaneseq
        %v1721 = vshrl.u32 %v1720, 7
        %v1722 = vsub.s32 %v1719, %v1721
        %v1723 = vrot.slane %v1709, %v1722
        %v1724 = vcombine.low %v1559, %v1705
        %v1725 = vcombine.high %v1559, %v1705
        %v1727 = vunpack.c.l.s4 1983009808
        %v1728 = vunpack.c.0.s8 %v1727
        %v1729 = vlaneseq
        %v1730 = vshrl.u32 %v1729, 7
        %v1731 = vsub.s32 %v1728, %v1730
        %v1732 = vrot.slane %v1724, %v1731
        %v1734 = vunpack.c.l.s4 1983009808
        %v1735 = vunpack.c.0.s8 %v1734
        %v1736 = vlaneseq
        %v1737 = vshrl.u32 %v1736, 7
        %v1738 = vsub.s32 %v1735, %v1737
        %v1739 = vrot.slane %v1725, %v1738
        %v1740 = vcombine.low %v1716, %v1732
        %v1741 = vcombine.high %v1716, %v1732
        %v1743 = vunpack.c.l.s4 1934713408
        %v1744 = vunpack.c.0.s8 %v1743
        %v1745 = vlaneseq
        %v1746 = vshrl.u32 %v1745, 7
        %v1747 = vsub.s32 %v1744, %v1746
        %v1748 = vrot.slane %v1740, %v1747
        %v1750 = vunpack.c.l.s4 1934713408
        %v1751 = vunpack.c.0.s8 %v1750
        %v1752 = vlaneseq
        %v1753 = vshrl.u32 %v1752, 7
        %v1754 = vsub.s32 %v1751, %v1753
        %v1755 = vrot.slane %v1741, %v1754
        %v1756 = vcombine.low %v1723, %v1739
        %v1757 = vcombine.high %v1723, %v1739
        %v1759 = vunpack.c.l.s4 1934713408
        %v1760 = vunpack.c.0.s8 %v1759
        %v1761 = vlaneseq
        %v1762 = vshrl.u32 %v1761, 7
        %v1763 = vsub.s32 %v1760, %v1762
        %v1764 = vrot.slane %v1756, %v1763
        %v1766 = vunpack.c.l.s4 1934713408
        %v1767 = vunpack.c.0.s8 %v1766
        %v1768 = vlaneseq
        %v1769 = vshrl.u32 %v1768, 7
        %v1770 = vsub.s32 %v1767, %v1769
        %v1771 = vrot.slane %v1757, %v1770
        %v1772 = vcombine.high %v1748, 0.0
        %v1773 = vcombine.high %v1755, 0.0
        %v1774 = vcombine.high %v1764, 0.0
        %v1775 = vcombine.high %v1771, 0.0
        %v1776 = vcombine.low %v1748, %v1755
        %v1778 = vunpack.c.l.s4 1983009808
        %v1779 = vunpack.c.0.s8 %v1778
        %v1780 = vlaneseq
        %v1781 = vshrl.u32 %v1780, 7
        %v1782 = vsub.s32 %v1779, %v1781
        %v1783 = vrot.slane %v1776, %v1782
        %v1784 = vcombine.low %v1772, %v1773
        %v1786 = vunpack.c.l.s4 1983009808
        %v1787 = vunpack.c.0.s8 %v1786
        %v1788 = vlaneseq
        %v1789 = vshrl.u32 %v1788, 7
        %v1790 = vsub.s32 %v1787, %v1789
        %v1791 = vrot.slane %v1784, %v1790
        %v1792 = vcombine.low %v1764, %v1771
        %v1794 = vunpack.c.l.s4 1983009808
        %v1795 = vunpack.c.0.s8 %v1794
        %v1796 = vlaneseq
        %v1797 = vshrl.u32 %v1796, 7
        %v1798 = vsub.s32 %v1795, %v1797
        %v1799 = vrot.slane %v1792, %v1798
        %v1800 = vcombine.low %v1774, %v1775
        %v1802 = vunpack.c.l.s4 1983009808
        %v1803 = vunpack.c.0.s8 %v1802
        %v1804 = vlaneseq
        %v1805 = vshrl.u32 %v1804, 7
        %v1806 = vsub.s32 %v1803, %v1805
        %v1807 = vrot.slane %v1800, %v1806
        %v1808 = vcombine.low %v1783, %v1791
        %v1809 = vcombine.high %v1783, %v1791
        %v1811 = vunpack.c.l.s4 1934713408
        %v1812 = vunpack.c.0.s8 %v1811
        %v1813 = vlaneseq
        %v1814 = vshrl.u32 %v1813, 7
        %v1815 = vsub.s32 %v1812, %v1814
        %v1816 = vrot.slane %v1808, %v1815
        %v1818 = vunpack.c.l.s4 1934713408
        %v1819 = vunpack.c.0.s8 %v1818
        %v1820 = vlaneseq
        %v1821 = vshrl.u32 %v1820, 7
        %v1822 = vsub.s32 %v1819, %v1821
        %v1823 = vrot.slane %v1809, %v1822
        %v1824 = vcombine.low %v1799, %v1807
        %v1825 = vcombine.high %v1799, %v1807
        %v1827 = vunpack.c.l.s4 1934713408
        %v1828 = vunpack.c.0.s8 %v1827
        %v1829 = vlaneseq
        %v1830 = vshrl.u32 %v1829, 7
        %v1831 = vsub.s32 %v1828, %v1830
        %v1832 = vrot.slane %v1824, %v1831
        %v1834 = vunpack.c.l.s4 1934713408
        %v1835 = vunpack.c.0.s8 %v1834
        %v1836 = vlaneseq
        %v1837 = vshrl.u32 %v1836, 7
        %v1838 = vsub.s32 %v1835, %v1837
        %v1839 = vrot.slane %v1825, %v1838
        %v1840 = vcombine.low %v1816, %v1832
        %v1841 = vcombine.high %v1816, %v1832
        %v1842 = vcombine.low %v1823, %v1839
        %v1843 = vcombine.high %v1823, %v1839
        %1845 = vrot.lane.b32.xlu0 %v1841, 8
        %v1846 = vpop.permute.xlu0 %1845
        %1849 = vrot.lane.b32.xlu0 %v1842, 16
        %v1850 = vpop.permute.xlu0 %1849
        %1853 = vrot.lane.b32.xlu0 %v1843, 24
        %v1854 = vpop.permute.xlu0 %1853
        %v1856 = vsel %vm1067, %v1840, %v1846
        %vm1857 = vcmask 130048
        %v1858 = vsel %vm1857, %v1856, %v1850
        %vm1859 = vcmask 195584
        %v1860 = vsel %vm1859, %v1858, %v1854
        %v1861 = vld [vmem:[#allocation10] sm:$0xff]
        %v1862 = vld [vmem:[#allocation10 + $0x8] sm:$0xff]
        %v1863 = vld [vmem:[#allocation10 + $0x10] sm:$0xff]
        %v1864 = vld [vmem:[#allocation10 + $0x18] sm:$0xff]
        %v1865 = vld [vmem:[%s7] sm:$0x1]
        %v1867 = vlaneseq
        %v1868 = vshrl.u32 %v1867, 7
        %v1869 = vsub.s32 0, %v1868
        %v1870 = vrot.slane %v1865, %v1869
        %v1873 = vsel %vm469, %v1860, 0
        %1875 = vmatprep.subr.mxu0 0.0
        %1876 = vmatpush1.msra.mxu0 %v1861
        %1877 = vmatprep.subr.mxu0 0.0
        %1878 = vmatpush1.msra.mxu0 %v1862
        %1879 = vmatprep.subr.mxu0 0.0
        %1880 = vmatpush1.msra.mxu0 %v1863
        %1881 = vmatprep.subr.mxu0 0.0
        %1882 = vmatpush1.msra.mxu0 %v1864
        %1883 = vmatprep.subr.mxu0 0.0
        %1884 = vmatpush1.msra.mxu0 0.0
        %1885 = vmatprep.subr.mxu0 0.0
        %1886 = vmatpush1.msra.mxu0 0.0
        %1887 = vmatprep.subr.mxu0 0.0
        %1888 = vmatpush1.msra.mxu0 0.0
        %1889 = vmatprep.subr.mxu0 0.0
        %1890 = vmatpush1.msra.mxu0 0.0
        %1891 = vmatprep.subr.mxu0 0.0
        %1892 = vmatpush1.msra.mxu0 0.0
        %1893 = vmatprep.subr.mxu0 0.0
        %1894 = vmatpush1.msra.mxu0 0.0
        %1895 = vmatprep.subr.mxu0 0.0
        %1896 = vmatpush1.msra.mxu0 0.0
        %1897 = vmatprep.subr.mxu0 0.0
        %1898 = vmatpush1.msra.mxu0 0.0
        %1899 = vmatprep.subr.mxu0 0.0
        %1900 = vmatpush1.msra.mxu0 0.0
        %1901 = vmatprep.subr.mxu0 0.0
        %1902 = vmatpush1.msra.mxu0 0.0
        %1903 = vmatprep.subr.mxu0 0.0
        %1904 = vmatpush1.msra.mxu0 0.0
        %1905 = vmatprep.subr.mxu0 0.0
        %1906 = vmatpush1.msra.mxu0 0.0
        %1907 = vmatprep.subr.mxu0 0.0
        %1908 = vmatpush1.msra.mxu0 0.0
        %1909 = vmatprep.subr.mxu0 0.0
        %1910 = vmatpush1.msra.mxu0 0.0
        %1911 = vmatprep.subr.mxu0 0.0
        %1912 = vmatpush1.msra.mxu0 0.0
        %1913 = vmatprep.subr.mxu0 0.0
        %1914 = vmatpush1.msra.mxu0 0.0
        %1915 = vmatprep.subr.mxu0 0.0
        %1916 = vmatpush1.msra.mxu0 0.0
        %1917 = vmatprep.subr.mxu0 0.0
        %1918 = vmatpush1.msra.mxu0 0.0
        %1919 = vmatprep.subr.mxu0 0.0
        %1920 = vmatpush1.msra.mxu0 0.0
        %1921 = vmatprep.subr.mxu0 0.0
        %1922 = vmatpush1.msra.mxu0 0.0
        %1923 = vmatprep.subr.mxu0 0.0
        %1924 = vmatpush1.msra.mxu0 0.0
        %1925 = vmatprep.subr.mxu0 0.0
        %1926 = vmatpush1.msra.mxu0 0.0
        %1927 = vmatprep.subr.mxu0 0.0
        %1928 = vmatpush1.msra.mxu0 0.0
        %1929 = vmatprep.subr.mxu0 0.0
        %1930 = vmatpush1.msra.mxu0 0.0
        %1931 = vmatprep.subr.mxu0 0.0
        %1932 = vmatpush1.msra.mxu0 0.0
        %1933 = vmatprep.subr.mxu0 0.0
        %1934 = vmatpush1.msra.mxu0 0.0
        %1935 = vmatprep.subr.mxu0 0.0
        %1936 = vmatpush1.msra.mxu0 0.0
        %1937 = vmatprep.subr.mxu0 0.0
        %1938 = vmatpush1.msra.mxu0 0.0
        %1939 = vmatprep.mubr.f32.mxu0 0.0
        %1940 = vmatmul.mubr.f32.gmra.mrb[0].mxu0 %v1873
        %v1941 = vpop.f32.mrb[0].mxu0
        %v1942 = vadd.f32 %v1870, %v1941
        %v1943 = vpop.f32.mrb[0].mxu0
        %1944 = vdwg.mxu0
        %v1945 = vadd.f32 %v455, %v1942
        %v1946 = vsel %vm469, %v1945, 0.0
        %1947 = vadd.xlane.f32.xlu0 %v1946
        %v1948 = vpop.xlane.xlu0 %1947
        %v1949 = vrcp.pop 32.0
        %v1950 = vmul.f32 %v1948, %v1949
        %v1951 = vsub.f32 %v1945, %v1950
        %v1952 = vmul.f32 %v1951, %v1951
        %v1953 = vsel %vm469, %v1952, 0.0
        %1954 = vadd.xlane.f32.xlu0 %v1953
        %v1955 = vpop.xlane.xlu0 %1954
        %v1956 = vmul.f32 %v1955, %v1949
        %v1957 = vadd.f32 %v1956, 1e-05
        %v1958 = vrsqrt.pop %v1957
        %v1959 = vmul.f32 %v1951, %v1958
        %v1960 = vld [vmem:[%s8] sm:$0x1]
        %v1962 = vlaneseq
        %v1963 = vshrl.u32 %v1962, 7
        %v1964 = vsub.s32 0, %v1963
        %v1965 = vrot.slane %v1960, %v1964
        %v1967 = vmul.f32 %v1959, %v1965
        %v1968 = vld [vmem:[%s9] sm:$0x1]
        %v1970 = vlaneseq
        %v1971 = vshrl.u32 %v1970, 7
        %v1972 = vsub.s32 0, %v1971
        %v1973 = vrot.slane %v1968, %v1972
        %v1975 = vadd.f32 %v1967, %v1973
        %1976 = vst.msk [vmem:[%s454] sm:$0xff] %vm469, %v1975
        %s1977 = sand.u32 %s259, 1
        %s1978 = scalar_lea.sflag [#allocation4], %s1977
        %s1979 = sand.u32 %s259, 1
        %s1980 = smul.addr %s1979, 8
        %s1981 = scalar_lea.vmem [#allocation11], %s1980
        // Predicated region
        $region81: #{tpu_custom_call.1} parent=59 // pred_check
          %p1982 = pneg %p269
        $region82: #{tpu_custom_call.1} parent=59 // pred_check_branch
          %1984 = sbr.rel (%p1982) target = $region84
        $region83: #{tpu_custom_call.1} parent=59 // pred_region
          %s1986 = ssub.s32 128, 128
          %1987 = vsyncadd %s1978, %s1986
          %s1988 = smul.addr %s31, 128
          %s1989 = scalar_lea.hbm %s10, %s1988
          %s1991 = sshll.u32 %s1981, 4
          %s1992 = int_to_ptr.vmem [resolvable:$true] %s1991
          %1994 = dma.vmem_to_hbm [thread:$0]  %s1992, 128, %s1989, %s1978
        $region84: #{tpu_custom_call.1} parent=59 // pred_fallthru
          _
      $region60: #{tpu_custom_call.1} parent=5 // pred_fallthru
        _
      %p1995 = scmp.le.s32.totalorder 2, %s26
      // Predicated region
      $region85: #{tpu_custom_call.1} parent=5 // pred_check
        %p1996 = pneg %p1995
      $region86: #{tpu_custom_call.1} parent=5 // pred_check_branch
        %1998 = sbr.rel (%p1996) target = $region88
      $region87: #{tpu_custom_call.1} parent=5 // pred_region
        %s1999 = ssub.s32 %s26, 2
        // Predicated region
        $region89: #{tpu_custom_call.1} parent=87 // pred_check
          %p2000 = pneg %p275
        $region90: #{tpu_custom_call.1} parent=87 // pred_check_branch
          %2002 = sbr.rel (%p2000) target = $region92
        $region91: #{tpu_custom_call.1} parent=87 // pred_region
          %s2003 = sand.u32 %s260, 1
          %s2004 = scalar_lea.sflag [#allocation4], %s2003
          %s2005 = sand.u32 %s260, 1
          %s2006 = smul.addr %s2005, 8
          %s2007 = scalar_lea.vmem [#allocation11], %s2006
          %2008 = dma.done %s2004, 128
        $region92: #{tpu_custom_call.1} parent=87 // pred_fallthru
          _
      $region88: #{tpu_custom_call.1} parent=5 // pred_fallthru
        _
    $region6: #{tpu_custom_call.1} parent=1 // loop_footer
      %s30 = sadd.s32 1, %s26
    $region7: #{tpu_custom_call.1} parent=1 // loop_footer_branch
      %25 = sbr.rel target = $region3
    $region8: #{tpu_custom_call.1} parent=1 // loop_exit
      _
    %2009 = vsyncpa [#allocation3], 1
    %s2010 = scalar_lea.sflag [#allocation3], 1
    %2011 = vsyncpa %s2010, 1
    %2012 = vsyncpa [#allocation6], 1
    %s2013 = scalar_lea.sflag [#allocation6], 1
    %2014 = vsyncpa %s2013, 1
    %2015 = vsyncpa [#allocation9], 1
    %2016 = vsyncpa [#allocation4], 1
    %s2017 = scalar_lea.sflag [#allocation4], 1
    %2018 = vsyncpa %s2017, 1

</llo_original>
